<compile_context>
chip_gen: v7x
topology: tpu7x:2x2x1
jax: 0.10.0
libtpu: 0.0.40
codegen_flags: <defaults>
</compile_context>

<pallas_src>
import functools

import jax
import jax.numpy as jnp
from jax.experimental import pallas as pl
from jax.experimental.pallas import tpu as pltpu


def _fold_polyphase_weights(w_hwio, s):
    """Fold 3x3 taps that hit the same original pixel under nearest x`s` upsample.

    For output sub-pixel phase (py, px) (y = s*r + py, x = s*c + px) the conv
    tap (kh, kw) reads padded-original pixel (r + dh, c + dw) with
    d(p, k) = (p - 1 + k) // s + 1.  Taps sharing (dh, dw) are summed.

    Returns:
      wf:    (n_folded_taps, C_in, C_out) folded weight blocks.
      taps:  tuple over phase q = py*s + px of tuples (dh, dw, weight_index).
    """
    KH, KW, _, _ = w_hwio.shape
    blocks = []
    taps = []
    for py in range(s):
        for px in range(s):
            dh = [(py - 1 + kh) // s + 1 for kh in range(KH)]
            dw = [(px - 1 + kw) // s + 1 for kw in range(KW)]
            phase = []
            for d_r in sorted(set(dh)):
                for d_c in sorted(set(dw)):
                    blk = 0.0
                    for kh in range(KH):
                        if dh[kh] != d_r:
                            continue
                        for kw in range(KW):
                            if dw[kw] == d_c:
                                blk = blk + w_hwio[kh, kw]
                    phase.append((d_r, d_c, len(blocks)))
                    blocks.append(blk)
            taps.append(tuple(phase))
    wf = jnp.stack(blocks, axis=0)
    return wf, tuple(taps)


def _pick_tile_rows(H0, s, target_out_rows):
    """Largest original-row tile that divides H0 and keeps <= target output rows."""
    cap = max(1, int(target_out_rows) // s)
    best = 1
    for cand in range(1, min(H0, cap) + 1):
        if H0 % cand == 0:
            best = cand
    return best


def _resize_conv_kernel(x_ref, w_ref, b_ref, o_ref, *, scale, phase_taps,
                        compute_dtype):
    """One (batch, row-tile) step of the polyphase upsample+conv.

    x_ref: (1, H0+2, Wp, C_in)      zero-padded original image (Wp % 8 == 0)
    w_ref: (n_taps, C_in, C_out)    folded polyphase weights
    b_ref: (1, C_out)               bias
    o_ref: (1, TH0, s*s, W0, C_out) phase-separated output tile
    """
    s = scale
    _, TH0, _n_phase, W0, C_out = o_ref.shape
    Wp = x_ref.shape[2]
    C_in = x_ref.shape[3]

    t = pl.program_id(1)
    row0 = pl.multiple_of(t * TH0, TH0)
    # TH0 interior original rows + one halo row above/below (already 0-padded).
    slab = x_ref[0, pl.ds(row0, TH0 + 2)].astype(compute_dtype)  # (TH0+2, Wp, Cin)

    # One zero guard row keeps the throw-away tail of the flattened tap windows
    # in bounds (those columns are sliced off before the store).
    max_dr = max(d for ph in phase_taps for d, _, _ in ph)
    max_dc = max(d for ph in phase_taps for _, d, _ in ph)
    extra = max(0, max_dr + (1 if max_dc > 0 else 0) - 2)
    if extra:
        slab = jnp.concatenate(
            [slab, jnp.zeros((extra,) + slab.shape[1:], slab.dtype)], axis=0)

    # Flatten (rows, Wp) -> rows*Wp once (Wp is 8-aligned, so this is an
    # aligned re-tiling); every folded tap is then a static row-offset slice of
    # this single array — no per-tap (H, W, C) -> (H*W, C) relayout.
    flat = slab.reshape(-1, C_in)
    w = w_ref[...].astype(compute_dtype)
    bias = b_ref[0].astype(jnp.float32)
    L = TH0 * Wp

    # Tap windows are shared between output phases: extract each distinct
    # (row_off, col_off) window once.
    patches = {}
    for ph in phase_taps:
        for d_r, d_c, _ in ph:
            if (d_r, d_c) not in patches:
                off = d_r * Wp + d_c
                patches[(d_r, d_c)] = flat[off:off + L]

    # No reduction grid axis -> the accumulator is a plain f32 value (no
    # scratch needed); at most 4 folded taps per phase for k=3, s>=2.
    for q, ph in enumerate(phase_taps):
        acc = jnp.zeros((L, C_out), dtype=jnp.float32)
        for d_r, d_c, widx in ph:
            acc = acc + jnp.dot(patches[(d_r, d_c)], w[widx],
                                preferred_element_type=jnp.float32)
        res = acc.reshape(TH0, Wp, C_out)[:, :W0, :] + bias
        # TODO(synk): for C_out < 128 a lane-packed (W0*C_out) store layout
        # would avoid masked vst; kept NHWC-style store for lowering safety.
        o_ref[0, :, q] = res.astype(o_ref.dtype)


def resize_conv2d(x_nchw, weight_oihw, bias, scale_factor, *,
                  tile_rows=256, compute_dtype=None):
    """Equivalent of ResizeConv2d.forward: interpolate(nearest, s) -> conv2d(3x3, pad=1)."""
    N, C_in, H0, W0 = x_nchw.shape
    C_out, C_in_w, KH, KW = weight_oihw.shape
    assert C_in_w == C_in
    # TODO(synk): fractional scale factors (allowed by F.interpolate 'nearest')
    # are not handled by this integer pixel-duplication kernel.
    s = int(scale_factor)
    assert s >= 1 and float(scale_factor) == float(s)
    # Index math is specialised to the module's fixed padding=1 "same" 3x3 conv.
    assert (KH, KW) == (3, 3), "kernel specialised to the module's 3x3 conv"

    if compute_dtype is None:
        compute_dtype = x_nchw.dtype
    Ho, Wo = s * H0, s * W0

    # --- original-resolution preprocessing only (the s^2-larger upsampled
    # tensor never exists in HBM).  NCHW -> NHWC plus a 1-pixel zero pad that
    # stands in for the conv padding after upsampling; right-pad so the padded
    # width is a multiple of 8 to keep in-kernel re-tilings aligned. ----------
    Wp = ((W0 + 2 + 7) // 8) * 8
    x_nhwc = jnp.transpose(x_nchw, (0, 2, 3, 1))
    x_pad = jnp.pad(x_nhwc, ((0, 0), (1, 1), (1, Wp - W0 - 1), (0, 0)))

    # --- polyphase (sub-pixel) weight folding --------------------------------
    w_hwio = jnp.transpose(weight_oihw, (2, 3, 1, 0))        # (KH, KW, Cin, Cout)
    wf, phase_taps = _fold_polyphase_weights(w_hwio, s)
    b2 = bias.reshape(1, C_out)

    TH0 = _pick_tile_rows(H0, s, tile_rows)   # original rows per grid step
    Ht = H0 // TH0

    kernel = functools.partial(_resize_conv_kernel, scale=s,
                               phase_taps=phase_taps,
                               compute_dtype=compute_dtype)

    out5 = pl.pallas_call(
        kernel,
        out_shape=jax.ShapeDtypeStruct((N, H0, s * s, W0, C_out), x_nchw.dtype),
        grid_spec=pltpu.PrefetchScalarGridSpec(
            num_scalar_prefetch=0,
            grid=(N, Ht),
            in_specs=[
                # Whole padded original-resolution image of batch n; constant
                # across the row-tile axis, so it is DMA'd once per batch.
                # TODO(synk): for very large inputs switch to a manually DMA'd
                # (TH0+2)-row halo slab (pl.ANY + make_async_copy) to bound
                # VMEM independently of H0*W0.
                pl.BlockSpec((1, H0 + 2, Wp, C_in), lambda n, t: (n, 0, 0, 0)),
                pl.BlockSpec(wf.shape, lambda n, t: (0, 0, 0)),
                pl.BlockSpec((1, C_out), lambda n, t: (0, 0)),
            ],
            out_specs=pl.BlockSpec((1, TH0, s * s, W0, C_out),
                                   lambda n, t: (n, t, 0, 0, 0)),
        ),
        compiler_params=pltpu.CompilerParams(
            dimension_semantics=("parallel", "parallel"),
            vmem_limit_bytes=48 * 1024 * 1024,   # sized for v7x's 64 MiB VMEM
        ),
    )(x_pad, wf, b2)

    # (N, H0, s, s, W0, Cout) -> NCHW (N, Cout, Ho, Wo).  This is the NHWC->NCHW
    # transpose owed to the PyTorch interface anyway; the polyphase interleave
    # rides along for free (no extra HBM pass).
    out = out5.reshape(N, H0, s, s, W0, C_out)
    out = jnp.transpose(out, (0, 5, 1, 2, 4, 3))
    return out.reshape(N, C_out, Ho, Wo)


if __name__ == "__main__":
    # Small deterministic config: in=4, out=8, kernel=3, scale=2, 16x16 input.
    N, C_in, H0, W0 = 2, 4, 16, 16
    C_out, K, SCALE = 8, 3, 2

    key = jax.random.PRNGKey(0)
    kx, kw, kb = jax.random.split(key, 3)

    x = jax.random.normal(kx, (N, C_in, H0, W0), dtype=jnp.float32)

    # Deterministic Conv2d-style init: U(-bound, bound), bound = 1/sqrt(fan_in)
    fan_in = C_in * K * K
    bound = 1.0 / (fan_in ** 0.5)
    weight = jax.random.uniform(kw, (C_out, C_in, K, K),
                                minval=-bound, maxval=bound, dtype=jnp.float32)
    bias = jax.random.uniform(kb, (C_out,),
                              minval=-bound, maxval=bound, dtype=jnp.float32)

    # Reference: plain-JAX nearest upsample + lax conv (matches PyTorch).
    x_up = jnp.repeat(jnp.repeat(x, SCALE, axis=2), SCALE, axis=3)
    ref = jax.lax.conv_general_dilated(
        x_up, weight, window_strides=(1, 1), padding=((1, 1), (1, 1)),
        dimension_numbers=('NCHW', 'OIHW', 'NCHW'),
    ) + bias.reshape(1, C_out, 1, 1)

    # Run with a small row tile (exercises the (N, H0//TH0) grid) and with the
    # default (single tile per batch element).
    for tr in (8, 256):
        out = resize_conv2d(x, weight, bias, SCALE, tile_rows=tr)
        out = jax.block_until_ready(out)
        assert out.shape == (N, C_out, H0 * SCALE, W0 * SCALE), out.shape
        err = float(jnp.max(jnp.abs(out - ref)))
        assert jnp.allclose(out, ref, atol=1e-4, rtol=1e-4), err

    print("KERNEL_OK")
</pallas_src>

<mosaic_0001>
module attributes {stable_mosaic.version = 11 : i64} {
  func.func @_resize_conv_kernel(%arg0: i32, %arg1: i32, %arg2: memref<1x18x24x4xf32, #tpu.memory_space<vmem>>, %arg3: memref<16x4x8xf32, #tpu.memory_space<vmem>>, %arg4: memref<1x8xf32, #tpu.memory_space<vmem>>, %arg5: memref<1x4x4x16x8xf32, #tpu.memory_space<vmem>>) attributes {dimension_semantics = [#tpu.dimension_semantics<parallel>, #tpu.dimension_semantics<parallel>], iteration_bounds = array<i64: 2, 4>, scalar_prefetch = 0 : i64, scratch_operands = 0 : i64, tpu.core_type = #tpu.core_type<tc>, window_params = [{transform_indices = @transform_0, window_bounds = array<i64: 1, 18, 24, 4>}, {pipeline_mode = #tpu.pipeline_mode<synchronous>, transform_indices = @transform_1, window_bounds = array<i64: 16, 4, 8>}, {pipeline_mode = #tpu.pipeline_mode<synchronous>, transform_indices = @transform_2, window_bounds = array<i64: 1, 8>}, {transform_indices = @transform_3, window_bounds = array<i64: 1, 4, 4, 16, 8>}]} {
    %c4_i32 = arith.constant 4 : i32
    %0 = arith.muli %arg1, %c4_i32 : i32
    %1 = tpu.assume_multiple %0, 4 : i32
    %c0 = arith.constant 0 : index
    %2 = arith.index_cast %1 : i32 to index
    %c0_0 = arith.constant 0 : index
    %c0_1 = arith.constant 0 : index
    %3 = vector.load %arg2[%c0, %2, %c0_0, %c0_1] : memref<1x18x24x4xf32, #tpu.memory_space<vmem>>, vector<1x6x24x4xf32>
    %4 = vector.shape_cast %3 : vector<1x6x24x4xf32> to vector<6x24x4xf32>
    %cst = arith.constant 0.000000e+00 : f32
    %5 = vector.broadcast %cst : f32 to vector<1x24x4xf32>
    %6 = tpu.concatenate %4, %5 in 0 : vector<6x24x4xf32>, vector<1x24x4xf32> -> vector<7x24x4xf32>
    %7 = vector.shape_cast %6 : vector<7x24x4xf32> to vector<168x4xf32>
    %c0_2 = arith.constant 0 : index
    %c0_3 = arith.constant 0 : index
    %c0_4 = arith.constant 0 : index
    %8 = vector.load %arg3[%c0_2, %c0_3, %c0_4] : memref<16x4x8xf32, #tpu.memory_space<vmem>>, vector<16x4x8xf32>
    %c0_5 = arith.constant 0 : index
    %c0_6 = arith.constant 0 : index
    %9 = vector.load %arg4[%c0_5, %c0_6] : memref<1x8xf32, #tpu.memory_space<vmem>>, vector<1x8xf32>
    %10 = vector.shape_cast %9 : vector<1x8xf32> to vector<8xf32>
    %11 = vector.extract_strided_slice %7 {offsets = [0, 0], sizes = [96, 4], strides = [1, 1]} : vector<168x4xf32> to vector<96x4xf32>
    %12 = vector.extract_strided_slice %7 {offsets = [1, 0], sizes = [96, 4], strides = [1, 1]} : vector<168x4xf32> to vector<96x4xf32>
    %13 = vector.extract_strided_slice %7 {offsets = [24, 0], sizes = [96, 4], strides = [1, 1]} : vector<168x4xf32> to vector<96x4xf32>
    %14 = vector.extract_strided_slice %7 {offsets = [25, 0], sizes = [96, 4], strides = [1, 1]} : vector<168x4xf32> to vector<96x4xf32>
    %15 = vector.extract_strided_slice %7 {offsets = [2, 0], sizes = [96, 4], strides = [1, 1]} : vector<168x4xf32> to vector<96x4xf32>
    %16 = vector.extract_strided_slice %7 {offsets = [26, 0], sizes = [96, 4], strides = [1, 1]} : vector<168x4xf32> to vector<96x4xf32>
    %17 = vector.extract_strided_slice %7 {offsets = [48, 0], sizes = [96, 4], strides = [1, 1]} : vector<168x4xf32> to vector<96x4xf32>
    %18 = vector.extract_strided_slice %7 {offsets = [49, 0], sizes = [96, 4], strides = [1, 1]} : vector<168x4xf32> to vector<96x4xf32>
    %19 = vector.extract_strided_slice %7 {offsets = [50, 0], sizes = [96, 4], strides = [1, 1]} : vector<168x4xf32> to vector<96x4xf32>
    %cst_7 = arith.constant 0.000000e+00 : f32
    %20 = vector.broadcast %cst_7 : f32 to vector<96x8xf32>
    %21 = vector.extract_strided_slice %8 {offsets = [0, 0, 0], sizes = [1, 4, 8], strides = [1, 1, 1]} : vector<16x4x8xf32> to vector<1x4x8xf32>
    %22 = vector.shape_cast %21 : vector<1x4x8xf32> to vector<4x8xf32>
    %cst_8 = arith.constant dense<0.000000e+00> : vector<96x8xf32>
    %23 = tpu.matmul %11, %22, %cst_8 {dimension_numbers = #tpu.dot_dimension_numbers<[1], [0], [0], [1], [0, 0, 1, 1], [], []>} : vector<96x4xf32>, vector<4x8xf32>, vector<96x8xf32> -> vector<96x8xf32>
    %24 = arith.addf %20, %23 : vector<96x8xf32>
    %25 = vector.extract_strided_slice %8 {offsets = [1, 0, 0], sizes = [1, 4, 8], strides = [1, 1, 1]} : vector<16x4x8xf32> to vector<1x4x8xf32>
    %26 = vector.shape_cast %25 : vector<1x4x8xf32> to vector<4x8xf32>
    %cst_9 = arith.constant dense<0.000000e+00> : vector<96x8xf32>
    %27 = tpu.matmul %12, %26, %cst_9 {dimension_numbers = #tpu.dot_dimension_numbers<[1], [0], [0], [1], [0, 0, 1, 1], [], []>} : vector<96x4xf32>, vector<4x8xf32>, vector<96x8xf32> -> vector<96x8xf32>
    %28 = arith.addf %24, %27 : vector<96x8xf32>
    %29 = vector.extract_strided_slice %8 {offsets = [2, 0, 0], sizes = [1, 4, 8], strides = [1, 1, 1]} : vector<16x4x8xf32> to vector<1x4x8xf32>
    %30 = vector.shape_cast %29 : vector<1x4x8xf32> to vector<4x8xf32>
    %cst_10 = arith.constant dense<0.000000e+00> : vector<96x8xf32>
    %31 = tpu.matmul %13, %30, %cst_10 {dimension_numbers = #tpu.dot_dimension_numbers<[1], [0], [0], [1], [0, 0, 1, 1], [], []>} : vector<96x4xf32>, vector<4x8xf32>, vector<96x8xf32> -> vector<96x8xf32>
    %32 = arith.addf %28, %31 : vector<96x8xf32>
    %33 = vector.extract_strided_slice %8 {offsets = [3, 0, 0], sizes = [1, 4, 8], strides = [1, 1, 1]} : vector<16x4x8xf32> to vector<1x4x8xf32>
    %34 = vector.shape_cast %33 : vector<1x4x8xf32> to vector<4x8xf32>
    %cst_11 = arith.constant dense<0.000000e+00> : vector<96x8xf32>
    %35 = tpu.matmul %14, %34, %cst_11 {dimension_numbers = #tpu.dot_dimension_numbers<[1], [0], [0], [1], [0, 0, 1, 1], [], []>} : vector<96x4xf32>, vector<4x8xf32>, vector<96x8xf32> -> vector<96x8xf32>
    %36 = arith.addf %32, %35 : vector<96x8xf32>
    %37 = vector.shape_cast %36 : vector<96x8xf32> to vector<4x24x8xf32>
    %38 = vector.extract_strided_slice %37 {offsets = [0, 0, 0], sizes = [4, 16, 8], strides = [1, 1, 1]} : vector<4x24x8xf32> to vector<4x16x8xf32>
    %39 = vector.shape_cast %10 : vector<8xf32> to vector<1x1x8xf32>
    %40 = vector.broadcast %39 : vector<1x1x8xf32> to vector<4x16x8xf32>
    %41 = arith.addf %38, %40 : vector<4x16x8xf32>
    %c0_12 = arith.constant 0 : index
    %c0_13 = arith.constant 0 : index
    %c0_14 = arith.constant 0 : index
    %c0_15 = arith.constant 0 : index
    %c0_16 = arith.constant 0 : index
    %42 = vector.load %arg5[%c0_12, %c0_13, %c0_14, %c0_15, %c0_16] : memref<1x4x4x16x8xf32, #tpu.memory_space<vmem>>, vector<1x4x1x16x8xf32>
    %43 = vector.shape_cast %42 : vector<1x4x1x16x8xf32> to vector<4x16x8xf32>
    %44 = vector.shape_cast %41 : vector<4x16x8xf32> to vector<1x4x1x16x8xf32>
    tpu.vector_store %arg5[%c0_12, %c0_13, %c0_14, %c0_15, %c0_16], %44 {strides = array<i32>} : memref<1x4x4x16x8xf32, #tpu.memory_space<vmem>>, vector<1x4x1x16x8xf32>,
    %cst_17 = arith.constant 0.000000e+00 : f32
    %45 = vector.broadcast %cst_17 : f32 to vector<96x8xf32>
    %46 = vector.extract_strided_slice %8 {offsets = [4, 0, 0], sizes = [1, 4, 8], strides = [1, 1, 1]} : vector<16x4x8xf32> to vector<1x4x8xf32>
    %47 = vector.shape_cast %46 : vector<1x4x8xf32> to vector<4x8xf32>
    %cst_18 = arith.constant dense<0.000000e+00> : vector<96x8xf32>
    %48 = tpu.matmul %12, %47, %cst_18 {dimension_numbers = #tpu.dot_dimension_numbers<[1], [0], [0], [1], [0, 0, 1, 1], [], []>} : vector<96x4xf32>, vector<4x8xf32>, vector<96x8xf32> -> vector<96x8xf32>
    %49 = arith.addf %45, %48 : vector<96x8xf32>
    %50 = vector.extract_strided_slice %8 {offsets = [5, 0, 0], sizes = [1, 4, 8], strides = [1, 1, 1]} : vector<16x4x8xf32> to vector<1x4x8xf32>
    %51 = vector.shape_cast %50 : vector<1x4x8xf32> to vector<4x8xf32>
    %cst_19 = arith.constant dense<0.000000e+00> : vector<96x8xf32>
    %52 = tpu.matmul %15, %51, %cst_19 {dimension_numbers = #tpu.dot_dimension_numbers<[1], [0], [0], [1], [0, 0, 1, 1], [], []>} : vector<96x4xf32>, vector<4x8xf32>, vector<96x8xf32> -> vector<96x8xf32>
    %53 = arith.addf %49, %52 : vector<96x8xf32>
    %54 = vector.extract_strided_slice %8 {offsets = [6, 0, 0], sizes = [1, 4, 8], strides = [1, 1, 1]} : vector<16x4x8xf32> to vector<1x4x8xf32>
    %55 = vector.shape_cast %54 : vector<1x4x8xf32> to vector<4x8xf32>
    %cst_20 = arith.constant dense<0.000000e+00> : vector<96x8xf32>
    %56 = tpu.matmul %14, %55, %cst_20 {dimension_numbers = #tpu.dot_dimension_numbers<[1], [0], [0], [1], [0, 0, 1, 1], [], []>} : vector<96x4xf32>, vector<4x8xf32>, vector<96x8xf32> -> vector<96x8xf32>
    %57 = arith.addf %53, %56 : vector<96x8xf32>
    %58 = vector.extract_strided_slice %8 {offsets = [7, 0, 0], sizes = [1, 4, 8], strides = [1, 1, 1]} : vector<16x4x8xf32> to vector<1x4x8xf32>
    %59 = vector.shape_cast %58 : vector<1x4x8xf32> to vector<4x8xf32>
    %cst_21 = arith.constant dense<0.000000e+00> : vector<96x8xf32>
    %60 = tpu.matmul %16, %59, %cst_21 {dimension_numbers = #tpu.dot_dimension_numbers<[1], [0], [0], [1], [0, 0, 1, 1], [], []>} : vector<96x4xf32>, vector<4x8xf32>, vector<96x8xf32> -> vector<96x8xf32>
    %61 = arith.addf %57, %60 : vector<96x8xf32>
    %62 = vector.shape_cast %61 : vector<96x8xf32> to vector<4x24x8xf32>
    %63 = vector.extract_strided_slice %62 {offsets = [0, 0, 0], sizes = [4, 16, 8], strides = [1, 1, 1]} : vector<4x24x8xf32> to vector<4x16x8xf32>
    %64 = vector.shape_cast %10 : vector<8xf32> to vector<1x1x8xf32>
    %65 = vector.broadcast %64 : vector<1x1x8xf32> to vector<4x16x8xf32>
    %66 = arith.addf %63, %65 : vector<4x16x8xf32>
    %c0_22 = arith.constant 0 : index
    %c0_23 = arith.constant 0 : index
    %c1 = arith.constant 1 : index
    %c0_24 = arith.constant 0 : index
    %c0_25 = arith.constant 0 : index
    %67 = vector.load %arg5[%c0_22, %c0_23, %c1, %c0_24, %c0_25] : memref<1x4x4x16x8xf32, #tpu.memory_space<vmem>>, vector<1x4x1x16x8xf32>
    %68 = vector.shape_cast %67 : vector<1x4x1x16x8xf32> to vector<4x16x8xf32>
    %69 = vector.shape_cast %66 : vector<4x16x8xf32> to vector<1x4x1x16x8xf32>
    tpu.vector_store %arg5[%c0_22, %c0_23, %c1, %c0_24, %c0_25], %69 {strides = array<i32>} : memref<1x4x4x16x8xf32, #tpu.memory_space<vmem>>, vector<1x4x1x16x8xf32>,
    %cst_26 = arith.constant 0.000000e+00 : f32
    %70 = vector.broadcast %cst_26 : f32 to vector<96x8xf32>
    %71 = vector.extract_strided_slice %8 {offsets = [8, 0, 0], sizes = [1, 4, 8], strides = [1, 1, 1]} : vector<16x4x8xf32> to vector<1x4x8xf32>
    %72 = vector.shape_cast %71 : vector<1x4x8xf32> to vector<4x8xf32>
    %cst_27 = arith.constant dense<0.000000e+00> : vector<96x8xf32>
    %73 = tpu.matmul %13, %72, %cst_27 {dimension_numbers = #tpu.dot_dimension_numbers<[1], [0], [0], [1], [0, 0, 1, 1], [], []>} : vector<96x4xf32>, vector<4x8xf32>, vector<96x8xf32> -> vector<96x8xf32>
    %74 = arith.addf %70, %73 : vector<96x8xf32>
    %75 = vector.extract_strided_slice %8 {offsets = [9, 0, 0], sizes = [1, 4, 8], strides = [1, 1, 1]} : vector<16x4x8xf32> to vector<1x4x8xf32>
    %76 = vector.shape_cast %75 : vector<1x4x8xf32> to vector<4x8xf32>
    %cst_28 = arith.constant dense<0.000000e+00> : vector<96x8xf32>
    %77 = tpu.matmul %14, %76, %cst_28 {dimension_numbers = #tpu.dot_dimension_numbers<[1], [0], [0], [1], [0, 0, 1, 1], [], []>} : vector<96x4xf32>, vector<4x8xf32>, vector<96x8xf32> -> vector<96x8xf32>
    %78 = arith.addf %74, %77 : vector<96x8xf32>
    %79 = vector.extract_strided_slice %8 {offsets = [10, 0, 0], sizes = [1, 4, 8], strides = [1, 1, 1]} : vector<16x4x8xf32> to vector<1x4x8xf32>
    %80 = vector.shape_cast %79 : vector<1x4x8xf32> to vector<4x8xf32>
    %cst_29 = arith.constant dense<0.000000e+00> : vector<96x8xf32>
    %81 = tpu.matmul %17, %80, %cst_29 {dimension_numbers = #tpu.dot_dimension_numbers<[1], [0], [0], [1], [0, 0, 1, 1], [], []>} : vector<96x4xf32>, vector<4x8xf32>, vector<96x8xf32> -> vector<96x8xf32>
    %82 = arith.addf %78, %81 : vector<96x8xf32>
    %83 = vector.extract_strided_slice %8 {offsets = [11, 0, 0], sizes = [1, 4, 8], strides = [1, 1, 1]} : vector<16x4x8xf32> to vector<1x4x8xf32>
    %84 = vector.shape_cast %83 : vector<1x4x8xf32> to vector<4x8xf32>
    %cst_30 = arith.constant dense<0.000000e+00> : vector<96x8xf32>
    %85 = tpu.matmul %18, %84, %cst_30 {dimension_numbers = #tpu.dot_dimension_numbers<[1], [0], [0], [1], [0, 0, 1, 1], [], []>} : vector<96x4xf32>, vector<4x8xf32>, vector<96x8xf32> -> vector<96x8xf32>
    %86 = arith.addf %82, %85 : vector<96x8xf32>
    %87 = vector.shape_cast %86 : vector<96x8xf32> to vector<4x24x8xf32>
    %88 = vector.extract_strided_slice %87 {offsets = [0, 0, 0], sizes = [4, 16, 8], strides = [1, 1, 1]} : vector<4x24x8xf32> to vector<4x16x8xf32>
    %89 = vector.shape_cast %10 : vector<8xf32> to vector<1x1x8xf32>
    %90 = vector.broadcast %89 : vector<1x1x8xf32> to vector<4x16x8xf32>
    %91 = arith.addf %88, %90 : vector<4x16x8xf32>
    %c0_31 = arith.constant 0 : index
    %c0_32 = arith.constant 0 : index
    %c2 = arith.constant 2 : index
    %c0_33 = arith.constant 0 : index
    %c0_34 = arith.constant 0 : index
    %92 = vector.load %arg5[%c0_31, %c0_32, %c2, %c0_33, %c0_34] : memref<1x4x4x16x8xf32, #tpu.memory_space<vmem>>, vector<1x4x1x16x8xf32>
    %93 = vector.shape_cast %92 : vector<1x4x1x16x8xf32> to vector<4x16x8xf32>
    %94 = vector.shape_cast %91 : vector<4x16x8xf32> to vector<1x4x1x16x8xf32>
    tpu.vector_store %arg5[%c0_31, %c0_32, %c2, %c0_33, %c0_34], %94 {strides = array<i32>} : memref<1x4x4x16x8xf32, #tpu.memory_space<vmem>>, vector<1x4x1x16x8xf32>,
    %cst_35 = arith.constant 0.000000e+00 : f32
    %95 = vector.broadcast %cst_35 : f32 to vector<96x8xf32>
    %96 = vector.extract_strided_slice %8 {offsets = [12, 0, 0], sizes = [1, 4, 8], strides = [1, 1, 1]} : vector<16x4x8xf32> to vector<1x4x8xf32>
    %97 = vector.shape_cast %96 : vector<1x4x8xf32> to vector<4x8xf32>
    %cst_36 = arith.constant dense<0.000000e+00> : vector<96x8xf32>
    %98 = tpu.matmul %14, %97, %cst_36 {dimension_numbers = #tpu.dot_dimension_numbers<[1], [0], [0], [1], [0, 0, 1, 1], [], []>} : vector<96x4xf32>, vector<4x8xf32>, vector<96x8xf32> -> vector<96x8xf32>
    %99 = arith.addf %95, %98 : vector<96x8xf32>
    %100 = vector.extract_strided_slice %8 {offsets = [13, 0, 0], sizes = [1, 4, 8], strides = [1, 1, 1]} : vector<16x4x8xf32> to vector<1x4x8xf32>
    %101 = vector.shape_cast %100 : vector<1x4x8xf32> to vector<4x8xf32>
    %cst_37 = arith.constant dense<0.000000e+00> : vector<96x8xf32>
    %102 = tpu.matmul %16, %101, %cst_37 {dimension_numbers = #tpu.dot_dimension_numbers<[1], [0], [0], [1], [0, 0, 1, 1], [], []>} : vector<96x4xf32>, vector<4x8xf32>, vector<96x8xf32> -> vector<96x8xf32>
    %103 = arith.addf %99, %102 : vector<96x8xf32>
    %104 = vector.extract_strided_slice %8 {offsets = [14, 0, 0], sizes = [1, 4, 8], strides = [1, 1, 1]} : vector<16x4x8xf32> to vector<1x4x8xf32>
    %105 = vector.shape_cast %104 : vector<1x4x8xf32> to vector<4x8xf32>
    %cst_38 = arith.constant dense<0.000000e+00> : vector<96x8xf32>
    %106 = tpu.matmul %18, %105, %cst_38 {dimension_numbers = #tpu.dot_dimension_numbers<[1], [0], [0], [1], [0, 0, 1, 1], [], []>} : vector<96x4xf32>, vector<4x8xf32>, vector<96x8xf32> -> vector<96x8xf32>
    %107 = arith.addf %103, %106 : vector<96x8xf32>
    %108 = vector.extract_strided_slice %8 {offsets = [15, 0, 0], sizes = [1, 4, 8], strides = [1, 1, 1]} : vector<16x4x8xf32> to vector<1x4x8xf32>
    %109 = vector.shape_cast %108 : vector<1x4x8xf32> to vector<4x8xf32>
    %cst_39 = arith.constant dense<0.000000e+00> : vector<96x8xf32>
    %110 = tpu.matmul %19, %109, %cst_39 {dimension_numbers = #tpu.dot_dimension_numbers<[1], [0], [0], [1], [0, 0, 1, 1], [], []>} : vector<96x4xf32>, vector<4x8xf32>, vector<96x8xf32> -> vector<96x8xf32>
    %111 = arith.addf %107, %110 : vector<96x8xf32>
    %112 = vector.shape_cast %111 : vector<96x8xf32> to vector<4x24x8xf32>
    %113 = vector.extract_strided_slice %112 {offsets = [0, 0, 0], sizes = [4, 16, 8], strides = [1, 1, 1]} : vector<4x24x8xf32> to vector<4x16x8xf32>
    %114 = vector.shape_cast %10 : vector<8xf32> to vector<1x1x8xf32>
    %115 = vector.broadcast %114 : vector<1x1x8xf32> to vector<4x16x8xf32>
    %116 = arith.addf %113, %115 : vector<4x16x8xf32>
    %c0_40 = arith.constant 0 : index
    %c0_41 = arith.constant 0 : index
    %c3 = arith.constant 3 : index
    %c0_42 = arith.constant 0 : index
    %c0_43 = arith.constant 0 : index
    %117 = vector.load %arg5[%c0_40, %c0_41, %c3, %c0_42, %c0_43] : memref<1x4x4x16x8xf32, #tpu.memory_space<vmem>>, vector<1x4x1x16x8xf32>
    %118 = vector.shape_cast %117 : vector<1x4x1x16x8xf32> to vector<4x16x8xf32>
    %119 = vector.shape_cast %116 : vector<4x16x8xf32> to vector<1x4x1x16x8xf32>
    tpu.vector_store %arg5[%c0_40, %c0_41, %c3, %c0_42, %c0_43], %119 {strides = array<i32>} : memref<1x4x4x16x8xf32, #tpu.memory_space<vmem>>, vector<1x4x1x16x8xf32>,
    return
  }
  func.func @transform_0(%arg0: i32, %arg1: i32) -> (i32, i32, i32, i32) {
    %c0_i32 = arith.constant 0 : i32
    %c0_i32_0 = arith.constant 0 : i32
    %c0_i32_1 = arith.constant 0 : i32
    %c0_i32_2 = arith.constant 0 : i32
    return %arg0, %c0_i32, %c0_i32_0, %c0_i32_1 : i32, i32, i32, i32
  }
  func.func @transform_1(%arg0: i32, %arg1: i32) -> (i32, i32, i32) {
    %c0_i32 = arith.constant 0 : i32
    %c0_i32_0 = arith.constant 0 : i32
    %c0_i32_1 = arith.constant 0 : i32
    %c0_i32_2 = arith.constant 0 : i32
    return %c0_i32, %c0_i32_0, %c0_i32_1 : i32, i32, i32
  }
  func.func @transform_2(%arg0: i32, %arg1: i32) -> (i32, i32) {
    %c0_i32 = arith.constant 0 : i32
    %c0_i32_0 = arith.constant 0 : i32
    %c0_i32_1 = arith.constant 0 : i32
    return %c0_i32, %c0_i32_0 : i32, i32
  }
  func.func @transform_3(%arg0: i32, %arg1: i32) -> (i32, i32, i32, i32, i32) {
    %c0_i32 = arith.constant 0 : i32
    %c0_i32_0 = arith.constant 0 : i32
    %c0_i32_1 = arith.constant 0 : i32
    %c0_i32_2 = arith.constant 0 : i32
    return %arg0, %arg1, %c0_i32, %c0_i32_0, %c0_i32_1 : i32, i32, i32, i32, i32
  }
}

</mosaic_0001>

<llo_original>
// kernel: tpu_custom_call.1
$region0: #{tpu_custom_call.1}
  #allocation0 [shape = 'u32[]', space=smem, size = 0x4, offset = 0x4, fixed_abs, tag = 'smem constant byte address 0x4 - core index']
  #allocation1 [shape = 'u32[144,128]{1,0:T(1,128)}', space=vmem, size = 0x12000, scoped, tag = 'internal scratch']
  %s0 = inlined_call_operand.vmem [shape: f32[2,18,24,4], index: 0, kind: input, shape index: {}]
  %s1 = inlined_call_operand.vmem [shape: f32[16,4,8], index: 1, kind: input, shape index: {}]
  %s2 = inlined_call_operand.vmem [shape: f32[1,8], index: 2, kind: input, shape index: {}]
  %s3 = inlined_call_operand.vmem [shape: f32[2,16,4,16,8], index: 3, kind: output, shape index: {}]
  %s4 = sld [smem:[#allocation0]]
  $region45: #{tpu_custom_call.1} parent=0
    _
  %s6 = ssub.s32 1, %s4
  %s7 = scalar_select 0, %s6, %s4
  loop: start=0, step=1, limit=10
  $region2: #{tpu_custom_call.1} parent=0 // loop_pre_header
    _
  $region3: #{tpu_custom_call.1} parent=0 // loop_header
    %s9 = sphi 0, %s13
    %p10 = scmp.ge.s32.totalorder %s9, 10
    %s16 = sphi 0, %s28
    %s17 = sphi 0, %s24
    %s18 = sphi 0, %s16
    %s19 = sphi 0, %s17
    %s20 = sphi 0, %s18
    %s21 = sphi 0, %s19
    %s31 = sphi 0, %s33
    %s34 = sphi 0, %s31
    %s35 = sphi 0, %s34
    %s51 = sphi 0, %s35
    %s55 = sphi 0, %s55
    %s57 = sphi 0, %s55
    %s58 = sphi 0, %s57
    %s72 = sphi 0, %s58
    %s76 = sphi 0, %s76
    %s78 = sphi 0, %s76
    %s79 = sphi 0, %s78
    %s93 = sphi 0, %s79
    %s101 = sphi 0, %s103
    %s104 = sphi 0, %s101
    %s105 = sphi 0, %s104
    %s121 = sphi 0, %s105
  $region4: #{tpu_custom_call.1} parent=0 // loop_header_branch
    %12 = sbr.rel (%p10) target = $region8
  $region5: #{tpu_custom_call.1} parent=0 // loop_body
    %s14 = ssub.s32 %s9, 1
    %s15 = ssub.s32 %s9, 2
    %s22 = sadd.s32 1, %s17
    %p23 = scmp.ge.s32.totalorder %s22, 4
    %s24 = scalar_select %p23, 0, %s22
    %s25 = sadd.s32 1, %s16
    %s26 = scalar_select %p23, %s25, %s16
    %p27 = scmp.ge.s32.totalorder %s26, 2
    %s28 = scalar_select %p27, 0, %s26
    %s29 = ssub.s32 %s16, %s28
    %p30 = scmp.eq.s32.totalorder %s29, 0
    %s32 = sadd.s32 %s31, 1
    %s33 = scalar_select %p30, %s31, %s32
    %p36 = pneg %p30
    %p37 = scmp.eq.s32.totalorder %s9, 7
    %p38 = por %p36, %p37
    %p39 = scmp.ne.s32.totalorder %s31, %s34
    %p40 = scmp.eq.s32.totalorder %s9, 0
    %p41 = por %p39, %p40
    %p42 = scmp.ne.s32.totalorder %s31, %s34
    %p43 = scmp.eq.s32.totalorder %s14, 7
    %p44 = por %p42, %p43
    %p45 = scmp.ne.s32.totalorder %s34, %s35
    %p46 = scmp.eq.s32.totalorder %s14, 0
    %p47 = por %p45, %p46
    %p48 = scmp.ne.s32.totalorder %s34, %s35
    %p49 = scmp.eq.s32.totalorder %s15, 7
    %p50 = por %p48, %p49
    %p52 = scmp.ne.s32.totalorder %s35, %s51
    %p53 = scmp.eq.s32.totalorder %s15, 0
    %p54 = por %p52, %p53
    %s56 = sadd.s32 %s55, 1
    %p59 = scmp.eq.s32.totalorder %s9, 7
    %p60 = scmp.ne.s32.totalorder %s55, %s57
    %p61 = scmp.eq.s32.totalorder %s9, 0
    %p62 = por %p60, %p61
    %p63 = scmp.ne.s32.totalorder %s55, %s57
    %p64 = scmp.eq.s32.totalorder %s14, 7
    %p65 = por %p63, %p64
    %p66 = scmp.ne.s32.totalorder %s57, %s58
    %p67 = scmp.eq.s32.totalorder %s14, 0
    %p68 = por %p66, %p67
    %p69 = scmp.ne.s32.totalorder %s57, %s58
    %p70 = scmp.eq.s32.totalorder %s15, 7
    %p71 = por %p69, %p70
    %p73 = scmp.ne.s32.totalorder %s58, %s72
    %p74 = scmp.eq.s32.totalorder %s15, 0
    %p75 = por %p73, %p74
    %s77 = sadd.s32 %s76, 1
    %p80 = scmp.eq.s32.totalorder %s9, 7
    %p81 = scmp.ne.s32.totalorder %s76, %s78
    %p82 = scmp.eq.s32.totalorder %s9, 0
    %p83 = por %p81, %p82
    %p84 = scmp.ne.s32.totalorder %s76, %s78
    %p85 = scmp.eq.s32.totalorder %s14, 7
    %p86 = por %p84, %p85
    %p87 = scmp.ne.s32.totalorder %s78, %s79
    %p88 = scmp.eq.s32.totalorder %s14, 0
    %p89 = por %p87, %p88
    %p90 = scmp.ne.s32.totalorder %s78, %s79
    %p91 = scmp.eq.s32.totalorder %s15, 7
    %p92 = por %p90, %p91
    %p94 = scmp.ne.s32.totalorder %s79, %s93
    %p95 = scmp.eq.s32.totalorder %s15, 0
    %p96 = por %p94, %p95
    %s97 = ssub.s32 %s16, %s28
    %s98 = ssub.s32 %s17, %s24
    %s99 = sor.u32 %s97, %s98
    %p100 = scmp.eq.s32.totalorder %s99, 0
    %s102 = sadd.s32 %s101, 1
    %s103 = scalar_select %p100, %s101, %s102
    %p106 = pneg %p100
    %p107 = scmp.eq.s32.totalorder %s9, 7
    %p108 = por %p106, %p107
    %p109 = scmp.ne.s32.totalorder %s101, %s104
    %p110 = scmp.eq.s32.totalorder %s9, 0
    %p111 = por %p109, %p110
    %p112 = scmp.ne.s32.totalorder %s101, %s104
    %p113 = scmp.eq.s32.totalorder %s14, 7
    %p114 = por %p112, %p113
    %p115 = scmp.ne.s32.totalorder %s104, %s105
    %p116 = scmp.eq.s32.totalorder %s14, 0
    %p117 = por %p115, %p116
    %p118 = scmp.ne.s32.totalorder %s104, %s105
    %p119 = scmp.eq.s32.totalorder %s15, 7
    %p120 = por %p118, %p119
    %p122 = scmp.ne.s32.totalorder %s105, %s121
    %p123 = scmp.eq.s32.totalorder %s15, 0
    %p124 = por %p122, %p123
    %p125 = scmp.le.s32.totalorder 1, %s9
    %p126 = scmp.lt.s32.totalorder %s9, 9
    %p127 = pnand %p125, %p126
    %p128 = pneg %p127
    // Predicated region
    $region9: #{tpu_custom_call.1} parent=5 // pred_check
      _
    $region10: #{tpu_custom_call.1} parent=5 // pred_check_branch
      %130 = sbr.rel (%p127) target = $region12
    $region11: #{tpu_custom_call.1} parent=5 // pred_region
      %s131 = ssub.s32 %s9, 1
      // Predicated region
      $region13: #{tpu_custom_call.1} parent=11 // pred_check
        %p132 = pneg %p68
      $region14: #{tpu_custom_call.1} parent=11 // pred_check_branch
        %134 = sbr.rel (%p132) target = $region16
      $region15: #{tpu_custom_call.1} parent=11 // pred_region
        _
      $region16: #{tpu_custom_call.1} parent=11 // pred_fallthru
        _
      // Predicated region
      $region17: #{tpu_custom_call.1} parent=11 // pred_check
        %p135 = pneg %p89
      $region18: #{tpu_custom_call.1} parent=11 // pred_check_branch
        %137 = sbr.rel (%p135) target = $region20
      $region19: #{tpu_custom_call.1} parent=11 // pred_region
        _
      $region20: #{tpu_custom_call.1} parent=11 // pred_fallthru
        _
    $region12: #{tpu_custom_call.1} parent=5 // pred_fallthru
      _
    %p138 = scmp.lt.s32.totalorder %s9, 8
    // Predicated region
    $region21: #{tpu_custom_call.1} parent=5 // pred_check
      %p139 = pneg %p138
    $region22: #{tpu_custom_call.1} parent=5 // pred_check_branch
      %141 = sbr.rel (%p139) target = $region24
    $region23: #{tpu_custom_call.1} parent=5 // pred_region
      // Predicated region
      $region25: #{tpu_custom_call.1} parent=23 // pred_check
        %p142 = pneg %p41
      $region26: #{tpu_custom_call.1} parent=23 // pred_check_branch
        %144 = sbr.rel (%p142) target = $region28
      $region27: #{tpu_custom_call.1} parent=23 // pred_region
        %p145 = scmp.lt.s32.totalorder %s16, 1
        %s146 = scalar_select %p145, %s16, 1
        %s147 = smul.addr %s146, 54
        %s148 = smul.addr %s147, 8
        %s149 = scalar_lea.vmem %s0, %s148
      $region28: #{tpu_custom_call.1} parent=23 // pred_fallthru
        _
    $region24: #{tpu_custom_call.1} parent=5 // pred_fallthru
      _
    %p150 = scmp.le.s32.totalorder 1, %s9
    %p151 = scmp.lt.s32.totalorder %s9, 9
    %p152 = pnand %p150, %p151
    %p153 = pneg %p152
    // Predicated region
    $region29: #{tpu_custom_call.1} parent=5 // pred_check
      _
    $region30: #{tpu_custom_call.1} parent=5 // pred_check_branch
      %155 = sbr.rel (%p152) target = $region32
    $region31: #{tpu_custom_call.1} parent=5 // pred_region
      %s156 = ssub.s32 %s9, 1
      %p157 = scmp.lt.s32.totalorder %s18, 1
      %s158 = scalar_select %p157, %s18, 1
      %s159 = smul.addr %s158, 54
      %s160 = smul.addr %s159, 8
      %s161 = scalar_lea.vmem %s0, %s160
      %p162 = pneg %p47
      %p163 = pneg %p44
      %p164 = pneg %p68
      %p165 = pneg %p65
      %p166 = pneg %p89
      %p167 = pneg %p86
      %p168 = pneg %p117
      %p169 = pneg %p114
      %s170 = smul.u32 4, %s19
      %p171 = scmp.lt.s32.totalorder %s18, 1
      %s172 = scalar_select %p171, %s18, 1
      %p173 = scmp.lt.s32.totalorder %s170, 15
      %s174 = scalar_select %p173, %s170, 15
      %s175 = smul.addr %s174, 8
      %s176 = smul.addr %s172, 128
      %s177 = sadd.s32 %s175, %s176
      %s178 = smul.addr %s177, 8
      %s179 = scalar_lea.vmem %s3, %s178
      %p180 = scmp.lt.s32.totalorder %s18, 1
      %s181 = scalar_select %p180, %s18, 1
      %s182 = smul.addr %s181, 54
      %s183 = smul.addr %s182, 8
      %s184 = scalar_lea.vmem %s0, %s183
      %s185 = smul.u32 4, %s19
      %p186 = scmp.lt.s32.totalorder %s18, 1
      %s187 = scalar_select %p186, %s18, 1
      %p188 = scmp.lt.s32.totalorder %s185, 15
      %s189 = scalar_select %p188, %s185, 15
      %s190 = smul.addr %s189, 8
      %s191 = smul.addr %s187, 128
      %s192 = sadd.s32 %s190, %s191
      %s193 = smul.addr %s192, 8
      %s194 = scalar_lea.vmem %s3, %s193
      %s195 = smul.u32 4, %s19
      %s196 = smul.u32 %s19, 4
      %s197 = smul.u32 %s196, 24
      %s198 = scalar_lea.vmem %s184, %s197
      %v199 = vld [vmem:[%s198] sm:$0xff]
      %v200 = vld [vmem:[%s198 + $0x8] sm:$0xff]
      %v201 = vld [vmem:[%s198 + $0x10] sm:$0xff]
      %v202 = vld [vmem:[%s198 + $0x18] sm:$0xff]
      %v203 = vld [vmem:[%s198 + $0x20] sm:$0xff]
      %v204 = vld [vmem:[%s198 + $0x28] sm:$0xff]
      %v205 = vld [vmem:[%s198 + $0x30] sm:$0xff]
      %v206 = vld [vmem:[%s198 + $0x38] sm:$0xff]
      %v207 = vld [vmem:[%s198 + $0x40] sm:$0xff]
      %v208 = vld [vmem:[%s198 + $0x48] sm:$0xff]
      %v209 = vld [vmem:[%s198 + $0x50] sm:$0xff]
      %v210 = vld [vmem:[%s198 + $0x58] sm:$0xff]
      %v211 = vld [vmem:[%s198 + $0x60] sm:$0xff]
      %v212 = vld [vmem:[%s198 + $0x68] sm:$0xff]
      %v213 = vld [vmem:[%s198 + $0x70] sm:$0xff]
      %v214 = vld [vmem:[%s198 + $0x78] sm:$0xff]
      %v215 = vld [vmem:[%s198 + $0x80] sm:$0xff]
      %v216 = vld [vmem:[%s198 + $0x88] sm:$0xff]
      %v217 = vld [vmem:[%s1] sm:$0xf]
      %v218 = vld [vmem:[%s1 + $0x4] sm:$0xf]
      %v219 = vld [vmem:[%s1 + $0x8] sm:$0xf]
      %v220 = vld [vmem:[%s1 + $0xc] sm:$0xf]
      %v221 = vld [vmem:[%s1 + $0x10] sm:$0xf]
      %v222 = vld [vmem:[%s1 + $0x14] sm:$0xf]
      %v223 = vld [vmem:[%s1 + $0x18] sm:$0xf]
      %v224 = vld [vmem:[%s1 + $0x1c] sm:$0xf]
      %v225 = vld [vmem:[%s1 + $0x20] sm:$0xf]
      %v226 = vld [vmem:[%s1 + $0x24] sm:$0xf]
      %v227 = vld [vmem:[%s1 + $0x28] sm:$0xf]
      %v228 = vld [vmem:[%s1 + $0x2c] sm:$0xf]
      %v229 = vld [vmem:[%s1 + $0x30] sm:$0xf]
      %v230 = vld [vmem:[%s1 + $0x34] sm:$0xf]
      %v231 = vld [vmem:[%s1 + $0x38] sm:$0xf]
      %v232 = vld [vmem:[%s1 + $0x3c] sm:$0xf]
      %v233 = vld [vmem:[%s2] sm:$0x1]
      %vm247 = vcmask 1046528
      %v248 = vrot.slane %v199, 1
      %v249 = vrot.slane %v200, 1
      %v250 = vsel %vm247, %v248, %v249
      %v251 = vrot.slane %v201, 1
      %v252 = vsel %vm247, %v249, %v251
      %v253 = vrot.slane %v202, 1
      %v254 = vsel %vm247, %v251, %v253
      %v255 = vrot.slane %v203, 1
      %v256 = vsel %vm247, %v253, %v255
      %v257 = vrot.slane %v204, 1
      %v258 = vsel %vm247, %v255, %v257
      %v259 = vrot.slane %v205, 1
      %v260 = vsel %vm247, %v257, %v259
      %v261 = vrot.slane %v206, 1
      %v262 = vsel %vm247, %v259, %v261
      %v263 = vrot.slane %v207, 1
      %v264 = vsel %vm247, %v261, %v263
      %v265 = vrot.slane %v208, 1
      %v266 = vsel %vm247, %v263, %v265
      %v267 = vrot.slane %v209, 1
      %v268 = vsel %vm247, %v265, %v267
      %v269 = vrot.slane %v210, 1
      %v270 = vsel %vm247, %v267, %v269
      %v271 = vrot.slane %v211, 1
      %v272 = vsel %vm247, %v269, %v271
      %vm273 = vcmask 31744
      %v274 = vsel %vm273, %v250, 0
      %v276 = vsel %vm273, %v252, 0
      %v278 = vsel %vm273, %v254, 0
      %v280 = vsel %vm273, %v256, 0
      %v282 = vsel %vm273, %v258, 0
      %v284 = vsel %vm273, %v260, 0
      %v286 = vsel %vm273, %v262, 0
      %v288 = vsel %vm273, %v264, 0
      %v290 = vsel %vm273, %v266, 0
      %v292 = vsel %vm273, %v268, 0
      %v294 = vsel %vm273, %v270, 0
      %v296 = vsel %vm273, %v272, 0
      %vm298 = vcmask 1043456
      %v300 = vsel %vm298, %v218, 0
      %302 = vmatprep.subr.mxu0 0.0
      %303 = vmatpush1.msra.mxu0 %v300
      %304 = vmatprep.subr.mxu0 0.0
      %305 = vmatpush1.msra.mxu0 0.0
      %306 = vmatprep.subr.mxu0 0.0
      %307 = vmatpush1.msra.mxu0 0.0
      %308 = vmatprep.subr.mxu0 0.0
      %309 = vmatpush1.msra.mxu0 0.0
      %310 = vmatprep.subr.mxu0 0.0
      %311 = vmatpush1.msra.mxu0 0.0
      %312 = vmatprep.subr.mxu0 0.0
      %313 = vmatpush1.msra.mxu0 0.0
      %314 = vmatprep.subr.mxu0 0.0
      %315 = vmatpush1.msra.mxu0 0.0
      %316 = vmatprep.subr.mxu0 0.0
      %317 = vmatpush1.msra.mxu0 0.0
      %318 = vmatprep.subr.mxu0 0.0
      %319 = vmatpush1.msra.mxu0 0.0
      %320 = vmatprep.subr.mxu0 0.0
      %321 = vmatpush1.msra.mxu0 0.0
      %322 = vmatprep.subr.mxu0 0.0
      %323 = vmatpush1.msra.mxu0 0.0
      %324 = vmatprep.subr.mxu0 0.0
      %325 = vmatpush1.msra.mxu0 0.0
      %326 = vmatprep.subr.mxu0 0.0
      %327 = vmatpush1.msra.mxu0 0.0
      %328 = vmatprep.subr.mxu0 0.0
      %329 = vmatpush1.msra.mxu0 0.0
      %330 = vmatprep.subr.mxu0 0.0
      %331 = vmatpush1.msra.mxu0 0.0
      %332 = vmatprep.subr.mxu0 0.0
      %333 = vmatpush1.msra.mxu0 0.0
      %334 = vmatprep.subr.mxu0 0.0
      %335 = vmatpush1.msra.mxu0 0.0
      %336 = vmatprep.subr.mxu0 0.0
      %337 = vmatpush1.msra.mxu0 0.0
      %338 = vmatprep.subr.mxu0 0.0
      %339 = vmatpush1.msra.mxu0 0.0
      %340 = vmatprep.subr.mxu0 0.0
      %341 = vmatpush1.msra.mxu0 0.0
      %342 = vmatprep.subr.mxu0 0.0
      %343 = vmatpush1.msra.mxu0 0.0
      %344 = vmatprep.subr.mxu0 0.0
      %345 = vmatpush1.msra.mxu0 0.0
      %346 = vmatprep.subr.mxu0 0.0
      %347 = vmatpush1.msra.mxu0 0.0
      %348 = vmatprep.subr.mxu0 0.0
      %349 = vmatpush1.msra.mxu0 0.0
      %350 = vmatprep.subr.mxu0 0.0
      %351 = vmatpush1.msra.mxu0 0.0
      %352 = vmatprep.subr.mxu0 0.0
      %353 = vmatpush1.msra.mxu0 0.0
      %354 = vmatprep.subr.mxu0 0.0
      %355 = vmatpush1.msra.mxu0 0.0
      %356 = vmatprep.subr.mxu0 0.0
      %357 = vmatpush1.msra.mxu0 0.0
      %358 = vmatprep.subr.mxu0 0.0
      %359 = vmatpush1.msra.mxu0 0.0
      %360 = vmatprep.subr.mxu0 0.0
      %361 = vmatpush1.msra.mxu0 0.0
      %362 = vmatprep.subr.mxu0 0.0
      %363 = vmatpush1.msra.mxu0 0.0
      %364 = vmatprep.subr.mxu0 0.0
      %365 = vmatpush1.msra.mxu0 0.0
      %366 = vmatprep.mubr.f32.mxu0 0.0
      %367 = vmatmul.mubr.f32.gmra.mrb[0].mxu0 %v274
      %v368 = vpop.f32.mrb[0].mxu0
      %v369 = vadd.f32 0.0, %v368
      %v370 = vpop.f32.mrb[0].mxu0
      %371 = vmatprep.mubr.f32.mxu0 0.0
      %372 = vmatmul.mubr.f32.gmra.mrb[0].mxu0 %v276
      %v373 = vpop.f32.mrb[0].mxu0
      %v374 = vadd.f32 0.0, %v373
      %v375 = vpop.f32.mrb[0].mxu0
      %376 = vmatprep.mubr.f32.mxu0 0.0
      %377 = vmatmul.mubr.f32.gmra.mrb[0].mxu0 %v278
      %v378 = vpop.f32.mrb[0].mxu0
      %v379 = vpop.f32.mrb[0].mxu0
      %380 = vmatprep.mubr.f32.mxu0 0.0
      %381 = vmatmul.mubr.f32.gmra.mrb[0].mxu0 %v280
      %v382 = vpop.f32.mrb[0].mxu0
      %v383 = vadd.f32 0.0, %v382
      %v384 = vpop.f32.mrb[0].mxu0
      %385 = vmatprep.mubr.f32.mxu0 0.0
      %386 = vmatmul.mubr.f32.gmra.mrb[0].mxu0 %v282
      %v387 = vpop.f32.mrb[0].mxu0
      %v388 = vadd.f32 0.0, %v387
      %v389 = vpop.f32.mrb[0].mxu0
      %390 = vmatprep.mubr.f32.mxu0 0.0
      %391 = vmatmul.mubr.f32.gmra.mrb[0].mxu0 %v284
      %v392 = vpop.f32.mrb[0].mxu0
      %v393 = vpop.f32.mrb[0].mxu0
      %394 = vmatprep.mubr.f32.mxu0 0.0
      %395 = vmatmul.mubr.f32.gmra.mrb[0].mxu0 %v286
      %v396 = vpop.f32.mrb[0].mxu0
      %v397 = vadd.f32 0.0, %v396
      %v398 = vpop.f32.mrb[0].mxu0
      %399 = vmatprep.mubr.f32.mxu0 0.0
      %400 = vmatmul.mubr.f32.gmra.mrb[0].mxu0 %v288
      %v401 = vpop.f32.mrb[0].mxu0
      %v402 = vadd.f32 0.0, %v401
      %v403 = vpop.f32.mrb[0].mxu0
      %404 = vmatprep.mubr.f32.mxu0 0.0
      %405 = vmatmul.mubr.f32.gmra.mrb[0].mxu0 %v290
      %v406 = vpop.f32.mrb[0].mxu0
      %v407 = vpop.f32.mrb[0].mxu0
      %408 = vmatprep.mubr.f32.mxu0 0.0
      %409 = vmatmul.mubr.f32.gmra.mrb[0].mxu0 %v292
      %v410 = vpop.f32.mrb[0].mxu0
      %v411 = vadd.f32 0.0, %v410
      %v412 = vpop.f32.mrb[0].mxu0
      %413 = vmatprep.mubr.f32.mxu0 0.0
      %414 = vmatmul.mubr.f32.gmra.mrb[0].mxu0 %v294
      %v415 = vpop.f32.mrb[0].mxu0
      %v416 = vadd.f32 0.0, %v415
      %v417 = vpop.f32.mrb[0].mxu0
      %418 = vmatprep.mubr.f32.mxu0 0.0
      %419 = vmatmul.mubr.f32.gmra.mrb[0].mxu0 %v296
      %v420 = vpop.f32.mrb[0].mxu0
      %v421 = vpop.f32.mrb[0].mxu0
      %422 = vdwg.mxu0
      %v423 = vsel %vm273, %v199, 0
      %v425 = vsel %vm273, %v200, 0
      %v427 = vsel %vm273, %v201, 0
      %v429 = vsel %vm273, %v202, 0
      %v431 = vsel %vm273, %v203, 0
      %v433 = vsel %vm273, %v204, 0
      %v435 = vsel %vm273, %v205, 0
      %v437 = vsel %vm273, %v206, 0
      %v439 = vsel %vm273, %v207, 0
      %v441 = vsel %vm273, %v208, 0
      %v443 = vsel %vm273, %v209, 0
      %v445 = vsel %vm273, %v210, 0
      %v448 = vsel %vm298, %v217, 0
      %450 = vmatprep.subr.mxu0 0.0
      %451 = vmatpush1.msra.mxu0 %v448
      %452 = vmatprep.subr.mxu0 0.0
      %453 = vmatpush1.msra.mxu0 0.0
      %454 = vmatprep.subr.mxu0 0.0
      %455 = vmatpush1.msra.mxu0 0.0
      %456 = vmatprep.subr.mxu0 0.0
      %457 = vmatpush1.msra.mxu0 0.0
      %458 = vmatprep.subr.mxu0 0.0
      %459 = vmatpush1.msra.mxu0 0.0
      %460 = vmatprep.subr.mxu0 0.0
      %461 = vmatpush1.msra.mxu0 0.0
      %462 = vmatprep.subr.mxu0 0.0
      %463 = vmatpush1.msra.mxu0 0.0
      %464 = vmatprep.subr.mxu0 0.0
      %465 = vmatpush1.msra.mxu0 0.0
      %466 = vmatprep.subr.mxu0 0.0
      %467 = vmatpush1.msra.mxu0 0.0
      %468 = vmatprep.subr.mxu0 0.0
      %469 = vmatpush1.msra.mxu0 0.0
      %470 = vmatprep.subr.mxu0 0.0
      %471 = vmatpush1.msra.mxu0 0.0
      %472 = vmatprep.subr.mxu0 0.0
      %473 = vmatpush1.msra.mxu0 0.0
      %474 = vmatprep.subr.mxu0 0.0
      %475 = vmatpush1.msra.mxu0 0.0
      %476 = vmatprep.subr.mxu0 0.0
      %477 = vmatpush1.msra.mxu0 0.0
      %478 = vmatprep.subr.mxu0 0.0
      %479 = vmatpush1.msra.mxu0 0.0
      %480 = vmatprep.subr.mxu0 0.0
      %481 = vmatpush1.msra.mxu0 0.0
      %482 = vmatprep.subr.mxu0 0.0
      %483 = vmatpush1.msra.mxu0 0.0
      %484 = vmatprep.subr.mxu0 0.0
      %485 = vmatpush1.msra.mxu0 0.0
      %486 = vmatprep.subr.mxu0 0.0
      %487 = vmatpush1.msra.mxu0 0.0
      %488 = vmatprep.subr.mxu0 0.0
      %489 = vmatpush1.msra.mxu0 0.0
      %490 = vmatprep.subr.mxu0 0.0
      %491 = vmatpush1.msra.mxu0 0.0
      %492 = vmatprep.subr.mxu0 0.0
      %493 = vmatpush1.msra.mxu0 0.0
      %494 = vmatprep.subr.mxu0 0.0
      %495 = vmatpush1.msra.mxu0 0.0
      %496 = vmatprep.subr.mxu0 0.0
      %497 = vmatpush1.msra.mxu0 0.0
      %498 = vmatprep.subr.mxu0 0.0
      %499 = vmatpush1.msra.mxu0 0.0
      %500 = vmatprep.subr.mxu0 0.0
      %501 = vmatpush1.msra.mxu0 0.0
      %502 = vmatprep.subr.mxu0 0.0
      %503 = vmatpush1.msra.mxu0 0.0
      %504 = vmatprep.subr.mxu0 0.0
      %505 = vmatpush1.msra.mxu0 0.0
      %506 = vmatprep.subr.mxu0 0.0
      %507 = vmatpush1.msra.mxu0 0.0
      %508 = vmatprep.subr.mxu0 0.0
      %509 = vmatpush1.msra.mxu0 0.0
      %510 = vmatprep.subr.mxu0 0.0
      %511 = vmatpush1.msra.mxu0 0.0
      %512 = vmatprep.subr.mxu0 0.0
      %513 = vmatpush1.msra.mxu0 0.0
      %514 = vmatprep.mubr.f32.mxu0 0.0
      %515 = vmatmul.mubr.f32.gmra.mrb[0].mxu0 %v423
      %v516 = vpop.f32.mrb[0].mxu0
      %v517 = vadd.f32 %v369, %v516
      %v518 = vpop.f32.mrb[0].mxu0
      %519 = vmatprep.mubr.f32.mxu0 0.0
      %520 = vmatmul.mubr.f32.gmra.mrb[0].mxu0 %v425
      %v521 = vpop.f32.mrb[0].mxu0
      %v522 = vadd.f32 %v374, %v521
      %v523 = vpop.f32.mrb[0].mxu0
      %524 = vmatprep.mubr.f32.mxu0 0.0
      %525 = vmatmul.mubr.f32.gmra.mrb[0].mxu0 %v427
      %v526 = vpop.f32.mrb[0].mxu0
      %v527 = vpop.f32.mrb[0].mxu0
      %528 = vmatprep.mubr.f32.mxu0 0.0
      %529 = vmatmul.mubr.f32.gmra.mrb[0].mxu0 %v429
      %v530 = vpop.f32.mrb[0].mxu0
      %v531 = vadd.f32 %v383, %v530
      %v532 = vpop.f32.mrb[0].mxu0
      %533 = vmatprep.mubr.f32.mxu0 0.0
      %534 = vmatmul.mubr.f32.gmra.mrb[0].mxu0 %v431
      %v535 = vpop.f32.mrb[0].mxu0
      %v536 = vadd.f32 %v388, %v535
      %v537 = vpop.f32.mrb[0].mxu0
      %538 = vmatprep.mubr.f32.mxu0 0.0
      %539 = vmatmul.mubr.f32.gmra.mrb[0].mxu0 %v433
      %v540 = vpop.f32.mrb[0].mxu0
      %v541 = vpop.f32.mrb[0].mxu0
      %542 = vmatprep.mubr.f32.mxu0 0.0
      %543 = vmatmul.mubr.f32.gmra.mrb[0].mxu0 %v435
      %v544 = vpop.f32.mrb[0].mxu0
      %v545 = vadd.f32 %v397, %v544
      %v546 = vpop.f32.mrb[0].mxu0
      %547 = vmatprep.mubr.f32.mxu0 0.0
      %548 = vmatmul.mubr.f32.gmra.mrb[0].mxu0 %v437
      %v549 = vpop.f32.mrb[0].mxu0
      %v550 = vadd.f32 %v402, %v549
      %v551 = vpop.f32.mrb[0].mxu0
      %552 = vmatprep.mubr.f32.mxu0 0.0
      %553 = vmatmul.mubr.f32.gmra.mrb[0].mxu0 %v439
      %v554 = vpop.f32.mrb[0].mxu0
      %v555 = vpop.f32.mrb[0].mxu0
      %556 = vmatprep.mubr.f32.mxu0 0.0
      %557 = vmatmul.mubr.f32.gmra.mrb[0].mxu0 %v441
      %v558 = vpop.f32.mrb[0].mxu0
      %v559 = vadd.f32 %v411, %v558
      %v560 = vpop.f32.mrb[0].mxu0
      %561 = vmatprep.mubr.f32.mxu0 0.0
      %562 = vmatmul.mubr.f32.gmra.mrb[0].mxu0 %v443
      %v563 = vpop.f32.mrb[0].mxu0
      %v564 = vadd.f32 %v416, %v563
      %v565 = vpop.f32.mrb[0].mxu0
      %566 = vmatprep.mubr.f32.mxu0 0.0
      %567 = vmatmul.mubr.f32.gmra.mrb[0].mxu0 %v445
      %v568 = vpop.f32.mrb[0].mxu0
      %v569 = vpop.f32.mrb[0].mxu0
      %570 = vdwg.mxu0
      %v571 = vsel %vm273, %v211, 0
      %v574 = vsel %vm273, %v212, 0
      %v577 = vsel %vm273, %v213, 0
      %v580 = vsel %vm298, %v219, 0
      %582 = vmatprep.subr.mxu0 0.0
      %583 = vmatpush1.msra.mxu0 %v580
      %584 = vmatprep.subr.mxu0 0.0
      %585 = vmatpush1.msra.mxu0 0.0
      %586 = vmatprep.subr.mxu0 0.0
      %587 = vmatpush1.msra.mxu0 0.0
      %588 = vmatprep.subr.mxu0 0.0
      %589 = vmatpush1.msra.mxu0 0.0
      %590 = vmatprep.subr.mxu0 0.0
      %591 = vmatpush1.msra.mxu0 0.0
      %592 = vmatprep.subr.mxu0 0.0
      %593 = vmatpush1.msra.mxu0 0.0
      %594 = vmatprep.subr.mxu0 0.0
      %595 = vmatpush1.msra.mxu0 0.0
      %596 = vmatprep.subr.mxu0 0.0
      %597 = vmatpush1.msra.mxu0 0.0
      %598 = vmatprep.subr.mxu0 0.0
      %599 = vmatpush1.msra.mxu0 0.0
      %600 = vmatprep.subr.mxu0 0.0
      %601 = vmatpush1.msra.mxu0 0.0
      %602 = vmatprep.subr.mxu0 0.0
      %603 = vmatpush1.msra.mxu0 0.0
      %604 = vmatprep.subr.mxu0 0.0
      %605 = vmatpush1.msra.mxu0 0.0
      %606 = vmatprep.subr.mxu0 0.0
      %607 = vmatpush1.msra.mxu0 0.0
      %608 = vmatprep.subr.mxu0 0.0
      %609 = vmatpush1.msra.mxu0 0.0
      %610 = vmatprep.subr.mxu0 0.0
      %611 = vmatpush1.msra.mxu0 0.0
      %612 = vmatprep.subr.mxu0 0.0
      %613 = vmatpush1.msra.mxu0 0.0
      %614 = vmatprep.subr.mxu0 0.0
      %615 = vmatpush1.msra.mxu0 0.0
      %616 = vmatprep.subr.mxu0 0.0
      %617 = vmatpush1.msra.mxu0 0.0
      %618 = vmatprep.subr.mxu0 0.0
      %619 = vmatpush1.msra.mxu0 0.0
      %620 = vmatprep.subr.mxu0 0.0
      %621 = vmatpush1.msra.mxu0 0.0
      %622 = vmatprep.subr.mxu0 0.0
      %623 = vmatpush1.msra.mxu0 0.0
      %624 = vmatprep.subr.mxu0 0.0
      %625 = vmatpush1.msra.mxu0 0.0
      %626 = vmatprep.subr.mxu0 0.0
      %627 = vmatpush1.msra.mxu0 0.0
      %628 = vmatprep.subr.mxu0 0.0
      %629 = vmatpush1.msra.mxu0 0.0
      %630 = vmatprep.subr.mxu0 0.0
      %631 = vmatpush1.msra.mxu0 0.0
      %632 = vmatprep.subr.mxu0 0.0
      %633 = vmatpush1.msra.mxu0 0.0
      %634 = vmatprep.subr.mxu0 0.0
      %635 = vmatpush1.msra.mxu0 0.0
      %636 = vmatprep.subr.mxu0 0.0
      %637 = vmatpush1.msra.mxu0 0.0
      %638 = vmatprep.subr.mxu0 0.0
      %639 = vmatpush1.msra.mxu0 0.0
      %640 = vmatprep.subr.mxu0 0.0
      %641 = vmatpush1.msra.mxu0 0.0
      %642 = vmatprep.subr.mxu0 0.0
      %643 = vmatpush1.msra.mxu0 0.0
      %644 = vmatprep.subr.mxu0 0.0
      %645 = vmatpush1.msra.mxu0 0.0
      %646 = vmatprep.mubr.f32.mxu0 0.0
      %647 = vmatmul.mubr.f32.gmra.mrb[0].mxu0 %v429
      %v648 = vpop.f32.mrb[0].mxu0
      %v649 = vadd.f32 0.0, %v648
      %v650 = vpop.f32.mrb[0].mxu0
      %651 = vmatprep.mubr.f32.mxu0 0.0
      %652 = vmatmul.mubr.f32.gmra.mrb[0].mxu0 %v431
      %v653 = vpop.f32.mrb[0].mxu0
      %v654 = vadd.f32 0.0, %v653
      %v655 = vpop.f32.mrb[0].mxu0
      %656 = vmatprep.mubr.f32.mxu0 0.0
      %657 = vmatmul.mubr.f32.gmra.mrb[0].mxu0 %v433
      %v658 = vpop.f32.mrb[0].mxu0
      %v659 = vpop.f32.mrb[0].mxu0
      %660 = vmatprep.mubr.f32.mxu0 0.0
      %661 = vmatmul.mubr.f32.gmra.mrb[0].mxu0 %v435
      %v662 = vpop.f32.mrb[0].mxu0
      %v663 = vadd.f32 0.0, %v662
      %v664 = vpop.f32.mrb[0].mxu0
      %665 = vmatprep.mubr.f32.mxu0 0.0
      %666 = vmatmul.mubr.f32.gmra.mrb[0].mxu0 %v437
      %v667 = vpop.f32.mrb[0].mxu0
      %v668 = vadd.f32 0.0, %v667
      %v669 = vpop.f32.mrb[0].mxu0
      %670 = vmatprep.mubr.f32.mxu0 0.0
      %671 = vmatmul.mubr.f32.gmra.mrb[0].mxu0 %v439
      %v672 = vpop.f32.mrb[0].mxu0
      %v673 = vpop.f32.mrb[0].mxu0
      %674 = vmatprep.mubr.f32.mxu0 0.0
      %675 = vmatmul.mubr.f32.gmra.mrb[0].mxu0 %v441
      %v676 = vpop.f32.mrb[0].mxu0
      %v677 = vadd.f32 0.0, %v676
      %v678 = vpop.f32.mrb[0].mxu0
      %679 = vmatprep.mubr.f32.mxu0 0.0
      %680 = vmatmul.mubr.f32.gmra.mrb[0].mxu0 %v443
      %v681 = vpop.f32.mrb[0].mxu0
      %v682 = vadd.f32 0.0, %v681
      %v683 = vpop.f32.mrb[0].mxu0
      %684 = vmatprep.mubr.f32.mxu0 0.0
      %685 = vmatmul.mubr.f32.gmra.mrb[0].mxu0 %v445
      %v686 = vpop.f32.mrb[0].mxu0
      %v687 = vpop.f32.mrb[0].mxu0
      %688 = vmatprep.mubr.f32.mxu0 0.0
      %689 = vmatmul.mubr.f32.gmra.mrb[0].mxu0 %v571
      %v690 = vpop.f32.mrb[0].mxu0
      %v691 = vadd.f32 0.0, %v690
      %v692 = vpop.f32.mrb[0].mxu0
      %693 = vmatprep.mubr.f32.mxu0 0.0
      %694 = vmatmul.mubr.f32.gmra.mrb[0].mxu0 %v574
      %v695 = vpop.f32.mrb[0].mxu0
      %v696 = vadd.f32 0.0, %v695
      %v697 = vpop.f32.mrb[0].mxu0
      %698 = vmatprep.mubr.f32.mxu0 0.0
      %699 = vmatmul.mubr.f32.gmra.mrb[0].mxu0 %v577
      %v700 = vpop.f32.mrb[0].mxu0
      %v701 = vpop.f32.mrb[0].mxu0
      %702 = vdwg.mxu0
      %v703 = vadd.f32 %v517, %v649
      %v704 = vadd.f32 %v522, %v654
      %v705 = vadd.f32 %v531, %v663
      %v706 = vadd.f32 %v536, %v668
      %v707 = vadd.f32 %v545, %v677
      %v708 = vadd.f32 %v550, %v682
      %v709 = vadd.f32 %v559, %v691
      %v710 = vadd.f32 %v564, %v696
      %v712 = vrot.slane %v212, 1
      %v713 = vsel %vm247, %v271, %v712
      %v714 = vrot.slane %v213, 1
      %v715 = vsel %vm247, %v712, %v714
      %v716 = vrot.slane %v214, 1
      %v717 = vsel %vm247, %v714, %v716
      %v718 = vsel %vm273, %v713, 0
      %v720 = vsel %vm273, %v715, 0
      %v722 = vsel %vm273, %v717, 0
      %v725 = vsel %vm298, %v220, 0
      %727 = vmatprep.subr.mxu0 0.0
      %728 = vmatpush1.msra.mxu0 %v725
      %729 = vmatprep.subr.mxu0 0.0
      %730 = vmatpush1.msra.mxu0 0.0
      %731 = vmatprep.subr.mxu0 0.0
      %732 = vmatpush1.msra.mxu0 0.0
      %733 = vmatprep.subr.mxu0 0.0
      %734 = vmatpush1.msra.mxu0 0.0
      %735 = vmatprep.subr.mxu0 0.0
      %736 = vmatpush1.msra.mxu0 0.0
      %737 = vmatprep.subr.mxu0 0.0
      %738 = vmatpush1.msra.mxu0 0.0
      %739 = vmatprep.subr.mxu0 0.0
      %740 = vmatpush1.msra.mxu0 0.0
      %741 = vmatprep.subr.mxu0 0.0
      %742 = vmatpush1.msra.mxu0 0.0
      %743 = vmatprep.subr.mxu0 0.0
      %744 = vmatpush1.msra.mxu0 0.0
      %745 = vmatprep.subr.mxu0 0.0
      %746 = vmatpush1.msra.mxu0 0.0
      %747 = vmatprep.subr.mxu0 0.0
      %748 = vmatpush1.msra.mxu0 0.0
      %749 = vmatprep.subr.mxu0 0.0
      %750 = vmatpush1.msra.mxu0 0.0
      %751 = vmatprep.subr.mxu0 0.0
      %752 = vmatpush1.msra.mxu0 0.0
      %753 = vmatprep.subr.mxu0 0.0
      %754 = vmatpush1.msra.mxu0 0.0
      %755 = vmatprep.subr.mxu0 0.0
      %756 = vmatpush1.msra.mxu0 0.0
      %757 = vmatprep.subr.mxu0 0.0
      %758 = vmatpush1.msra.mxu0 0.0
      %759 = vmatprep.subr.mxu0 0.0
      %760 = vmatpush1.msra.mxu0 0.0
      %761 = vmatprep.subr.mxu0 0.0
      %762 = vmatpush1.msra.mxu0 0.0
      %763 = vmatprep.subr.mxu0 0.0
      %764 = vmatpush1.msra.mxu0 0.0
      %765 = vmatprep.subr.mxu0 0.0
      %766 = vmatpush1.msra.mxu0 0.0
      %767 = vmatprep.subr.mxu0 0.0
      %768 = vmatpush1.msra.mxu0 0.0
      %769 = vmatprep.subr.mxu0 0.0
      %770 = vmatpush1.msra.mxu0 0.0
      %771 = vmatprep.subr.mxu0 0.0
      %772 = vmatpush1.msra.mxu0 0.0
      %773 = vmatprep.subr.mxu0 0.0
      %774 = vmatpush1.msra.mxu0 0.0
      %775 = vmatprep.subr.mxu0 0.0
      %776 = vmatpush1.msra.mxu0 0.0
      %777 = vmatprep.subr.mxu0 0.0
      %778 = vmatpush1.msra.mxu0 0.0
      %779 = vmatprep.subr.mxu0 0.0
      %780 = vmatpush1.msra.mxu0 0.0
      %781 = vmatprep.subr.mxu0 0.0
      %782 = vmatpush1.msra.mxu0 0.0
      %783 = vmatprep.subr.mxu0 0.0
      %784 = vmatpush1.msra.mxu0 0.0
      %785 = vmatprep.subr.mxu0 0.0
      %786 = vmatpush1.msra.mxu0 0.0
      %787 = vmatprep.subr.mxu0 0.0
      %788 = vmatpush1.msra.mxu0 0.0
      %789 = vmatprep.subr.mxu0 0.0
      %790 = vmatpush1.msra.mxu0 0.0
      %791 = vmatprep.mubr.f32.mxu0 0.0
      %792 = vmatmul.mubr.f32.gmra.mrb[0].mxu0 %v280
      %v793 = vpop.f32.mrb[0].mxu0
      %v794 = vadd.f32 0.0, %v793
      %v795 = vpop.f32.mrb[0].mxu0
      %796 = vmatprep.mubr.f32.mxu0 0.0
      %797 = vmatmul.mubr.f32.gmra.mrb[0].mxu0 %v282
      %v798 = vpop.f32.mrb[0].mxu0
      %v799 = vadd.f32 0.0, %v798
      %v800 = vpop.f32.mrb[0].mxu0
      %801 = vmatprep.mubr.f32.mxu0 0.0
      %802 = vmatmul.mubr.f32.gmra.mrb[0].mxu0 %v284
      %v803 = vpop.f32.mrb[0].mxu0
      %v804 = vpop.f32.mrb[0].mxu0
      %805 = vmatprep.mubr.f32.mxu0 0.0
      %806 = vmatmul.mubr.f32.gmra.mrb[0].mxu0 %v286
      %v807 = vpop.f32.mrb[0].mxu0
      %v808 = vadd.f32 0.0, %v807
      %v809 = vpop.f32.mrb[0].mxu0
      %810 = vmatprep.mubr.f32.mxu0 0.0
      %811 = vmatmul.mubr.f32.gmra.mrb[0].mxu0 %v288
      %v812 = vpop.f32.mrb[0].mxu0
      %v813 = vadd.f32 0.0, %v812
      %v814 = vpop.f32.mrb[0].mxu0
      %815 = vmatprep.mubr.f32.mxu0 0.0
      %816 = vmatmul.mubr.f32.gmra.mrb[0].mxu0 %v290
      %v817 = vpop.f32.mrb[0].mxu0
      %v818 = vpop.f32.mrb[0].mxu0
      %819 = vmatprep.mubr.f32.mxu0 0.0
      %820 = vmatmul.mubr.f32.gmra.mrb[0].mxu0 %v292
      %v821 = vpop.f32.mrb[0].mxu0
      %v822 = vadd.f32 0.0, %v821
      %v823 = vpop.f32.mrb[0].mxu0
      %824 = vmatprep.mubr.f32.mxu0 0.0
      %825 = vmatmul.mubr.f32.gmra.mrb[0].mxu0 %v294
      %v826 = vpop.f32.mrb[0].mxu0
      %v827 = vadd.f32 0.0, %v826
      %v828 = vpop.f32.mrb[0].mxu0
      %829 = vmatprep.mubr.f32.mxu0 0.0
      %830 = vmatmul.mubr.f32.gmra.mrb[0].mxu0 %v296
      %v831 = vpop.f32.mrb[0].mxu0
      %v832 = vpop.f32.mrb[0].mxu0
      %833 = vmatprep.mubr.f32.mxu0 0.0
      %834 = vmatmul.mubr.f32.gmra.mrb[0].mxu0 %v718
      %v835 = vpop.f32.mrb[0].mxu0
      %v836 = vadd.f32 0.0, %v835
      %v837 = vpop.f32.mrb[0].mxu0
      %838 = vmatprep.mubr.f32.mxu0 0.0
      %839 = vmatmul.mubr.f32.gmra.mrb[0].mxu0 %v720
      %v840 = vpop.f32.mrb[0].mxu0
      %v841 = vadd.f32 0.0, %v840
      %v842 = vpop.f32.mrb[0].mxu0
      %843 = vmatprep.mubr.f32.mxu0 0.0
      %844 = vmatmul.mubr.f32.gmra.mrb[0].mxu0 %v722
      %v845 = vpop.f32.mrb[0].mxu0
      %v846 = vpop.f32.mrb[0].mxu0
      %847 = vdwg.mxu0
      %v848 = vadd.f32 %v703, %v794
      %v849 = vadd.f32 %v704, %v799
      %v850 = vadd.f32 %v705, %v808
      %v851 = vadd.f32 %v706, %v813
      %v852 = vadd.f32 %v707, %v822
      %v853 = vadd.f32 %v708, %v827
      %v854 = vadd.f32 %v709, %v836
      %v855 = vadd.f32 %v710, %v841
      %v857 = vlaneseq
      %v858 = vshrl.u32 %v857, 7
      %v859 = vsub.s32 0, %v858
      %v860 = vrot.slane %v233, %v859
      %v862 = vadd.f32 %v848, %v860
      %v863 = vadd.f32 %v849, %v860
      %v864 = vadd.f32 %v850, %v860
      %v865 = vadd.f32 %v851, %v860
      %v866 = vadd.f32 %v852, %v860
      %v867 = vadd.f32 %v853, %v860
      %v868 = vadd.f32 %v854, %v860
      %v869 = vadd.f32 %v855, %v860
      %vm870 = vcmask 64512
      %871 = vst.msk [vmem:[%s194] sm:$0xff] %vm870, %v862
      %872 = vst.msk [vmem:[%s194 + $0x8] sm:$0xff] %vm870, %v863
      %873 = vst.msk [vmem:[%s194 + $0x40] sm:$0xff] %vm870, %v864
      %874 = vst.msk [vmem:[%s194 + $0x48] sm:$0xff] %vm870, %v865
      %875 = vst.msk [vmem:[%s194 + $0x80] sm:$0xff] %vm870, %v866
      %876 = vst.msk [vmem:[%s194 + $0x88] sm:$0xff] %vm870, %v867
      %877 = vst.msk [vmem:[%s194 + $0xc0] sm:$0xff] %vm870, %v868
      %878 = vst.msk [vmem:[%s194 + $0xc8] sm:$0xff] %vm870, %v869
      %vm879 = vcmask 1045504
      %v880 = vrot.slane %v199, 2
      %v881 = vrot.slane %v200, 2
      %v882 = vsel %vm879, %v880, %v881
      %v883 = vrot.slane %v201, 2
      %v884 = vsel %vm879, %v881, %v883
      %v885 = vrot.slane %v202, 2
      %v886 = vsel %vm879, %v883, %v885
      %v887 = vrot.slane %v203, 2
      %v888 = vsel %vm879, %v885, %v887
      %v889 = vrot.slane %v204, 2
      %v890 = vsel %vm879, %v887, %v889
      %v891 = vrot.slane %v205, 2
      %v892 = vsel %vm879, %v889, %v891
      %v893 = vrot.slane %v206, 2
      %v894 = vsel %vm879, %v891, %v893
      %v895 = vrot.slane %v207, 2
      %v896 = vsel %vm879, %v893, %v895
      %v897 = vrot.slane %v208, 2
      %v898 = vsel %vm879, %v895, %v897
      %v899 = vrot.slane %v209, 2
      %v900 = vsel %vm879, %v897, %v899
      %v901 = vrot.slane %v210, 2
      %v902 = vsel %vm879, %v899, %v901
      %v903 = vrot.slane %v211, 2
      %v904 = vsel %vm879, %v901, %v903
      %v905 = vsel %vm273, %v882, 0
      %v907 = vsel %vm273, %v884, 0
      %v909 = vsel %vm273, %v886, 0
      %v911 = vsel %vm273, %v888, 0
      %v913 = vsel %vm273, %v890, 0
      %v915 = vsel %vm273, %v892, 0
      %v917 = vsel %vm273, %v894, 0
      %v919 = vsel %vm273, %v896, 0
      %v921 = vsel %vm273, %v898, 0
      %v923 = vsel %vm273, %v900, 0
      %v925 = vsel %vm273, %v902, 0
      %v927 = vsel %vm273, %v904, 0
      %v930 = vsel %vm298, %v222, 0
      %932 = vmatprep.subr.mxu0 0.0
      %933 = vmatpush1.msra.mxu0 %v930
      %934 = vmatprep.subr.mxu0 0.0
      %935 = vmatpush1.msra.mxu0 0.0
      %936 = vmatprep.subr.mxu0 0.0
      %937 = vmatpush1.msra.mxu0 0.0
      %938 = vmatprep.subr.mxu0 0.0
      %939 = vmatpush1.msra.mxu0 0.0
      %940 = vmatprep.subr.mxu0 0.0
      %941 = vmatpush1.msra.mxu0 0.0
      %942 = vmatprep.subr.mxu0 0.0
      %943 = vmatpush1.msra.mxu0 0.0
      %944 = vmatprep.subr.mxu0 0.0
      %945 = vmatpush1.msra.mxu0 0.0
      %946 = vmatprep.subr.mxu0 0.0
      %947 = vmatpush1.msra.mxu0 0.0
      %948 = vmatprep.subr.mxu0 0.0
      %949 = vmatpush1.msra.mxu0 0.0
      %950 = vmatprep.subr.mxu0 0.0
      %951 = vmatpush1.msra.mxu0 0.0
      %952 = vmatprep.subr.mxu0 0.0
      %953 = vmatpush1.msra.mxu0 0.0
      %954 = vmatprep.subr.mxu0 0.0
      %955 = vmatpush1.msra.mxu0 0.0
      %956 = vmatprep.subr.mxu0 0.0
      %957 = vmatpush1.msra.mxu0 0.0
      %958 = vmatprep.subr.mxu0 0.0
      %959 = vmatpush1.msra.mxu0 0.0
      %960 = vmatprep.subr.mxu0 0.0
      %961 = vmatpush1.msra.mxu0 0.0
      %962 = vmatprep.subr.mxu0 0.0
      %963 = vmatpush1.msra.mxu0 0.0
      %964 = vmatprep.subr.mxu0 0.0
      %965 = vmatpush1.msra.mxu0 0.0
      %966 = vmatprep.subr.mxu0 0.0
      %967 = vmatpush1.msra.mxu0 0.0
      %968 = vmatprep.subr.mxu0 0.0
      %969 = vmatpush1.msra.mxu0 0.0
      %970 = vmatprep.subr.mxu0 0.0
      %971 = vmatpush1.msra.mxu0 0.0
      %972 = vmatprep.subr.mxu0 0.0
      %973 = vmatpush1.msra.mxu0 0.0
      %974 = vmatprep.subr.mxu0 0.0
      %975 = vmatpush1.msra.mxu0 0.0
      %976 = vmatprep.subr.mxu0 0.0
      %977 = vmatpush1.msra.mxu0 0.0
      %978 = vmatprep.subr.mxu0 0.0
      %979 = vmatpush1.msra.mxu0 0.0
      %980 = vmatprep.subr.mxu0 0.0
      %981 = vmatpush1.msra.mxu0 0.0
      %982 = vmatprep.subr.mxu0 0.0
      %983 = vmatpush1.msra.mxu0 0.0
      %984 = vmatprep.subr.mxu0 0.0
      %985 = vmatpush1.msra.mxu0 0.0
      %986 = vmatprep.subr.mxu0 0.0
      %987 = vmatpush1.msra.mxu0 0.0
      %988 = vmatprep.subr.mxu0 0.0
      %989 = vmatpush1.msra.mxu0 0.0
      %990 = vmatprep.subr.mxu0 0.0
      %991 = vmatpush1.msra.mxu0 0.0
      %992 = vmatprep.subr.mxu0 0.0
      %993 = vmatpush1.msra.mxu0 0.0
      %994 = vmatprep.subr.mxu0 0.0
      %995 = vmatpush1.msra.mxu0 0.0
      %996 = vmatprep.mubr.f32.mxu0 0.0
      %997 = vmatmul.mubr.f32.gmra.mrb[0].mxu0 %v905
      %v998 = vpop.f32.mrb[0].mxu0
      %v999 = vadd.f32 0.0, %v998
      %v1000 = vpop.f32.mrb[0].mxu0
      %1001 = vmatprep.mubr.f32.mxu0 0.0
      %1002 = vmatmul.mubr.f32.gmra.mrb[0].mxu0 %v907
      %v1003 = vpop.f32.mrb[0].mxu0
      %v1004 = vadd.f32 0.0, %v1003
      %v1005 = vpop.f32.mrb[0].mxu0
      %1006 = vmatprep.mubr.f32.mxu0 0.0
      %1007 = vmatmul.mubr.f32.gmra.mrb[0].mxu0 %v909
      %v1008 = vpop.f32.mrb[0].mxu0
      %v1009 = vpop.f32.mrb[0].mxu0
      %1010 = vmatprep.mubr.f32.mxu0 0.0
      %1011 = vmatmul.mubr.f32.gmra.mrb[0].mxu0 %v911
      %v1012 = vpop.f32.mrb[0].mxu0
      %v1013 = vadd.f32 0.0, %v1012
      %v1014 = vpop.f32.mrb[0].mxu0
      %1015 = vmatprep.mubr.f32.mxu0 0.0
      %1016 = vmatmul.mubr.f32.gmra.mrb[0].mxu0 %v913
      %v1017 = vpop.f32.mrb[0].mxu0
      %v1018 = vadd.f32 0.0, %v1017
      %v1019 = vpop.f32.mrb[0].mxu0
      %1020 = vmatprep.mubr.f32.mxu0 0.0
      %1021 = vmatmul.mubr.f32.gmra.mrb[0].mxu0 %v915
      %v1022 = vpop.f32.mrb[0].mxu0
      %v1023 = vpop.f32.mrb[0].mxu0
      %1024 = vmatprep.mubr.f32.mxu0 0.0
      %1025 = vmatmul.mubr.f32.gmra.mrb[0].mxu0 %v917
      %v1026 = vpop.f32.mrb[0].mxu0
      %v1027 = vadd.f32 0.0, %v1026
      %v1028 = vpop.f32.mrb[0].mxu0
      %1029 = vmatprep.mubr.f32.mxu0 0.0
      %1030 = vmatmul.mubr.f32.gmra.mrb[0].mxu0 %v919
      %v1031 = vpop.f32.mrb[0].mxu0
      %v1032 = vadd.f32 0.0, %v1031
      %v1033 = vpop.f32.mrb[0].mxu0
      %1034 = vmatprep.mubr.f32.mxu0 0.0
      %1035 = vmatmul.mubr.f32.gmra.mrb[0].mxu0 %v921
      %v1036 = vpop.f32.mrb[0].mxu0
      %v1037 = vpop.f32.mrb[0].mxu0
      %1038 = vmatprep.mubr.f32.mxu0 0.0
      %1039 = vmatmul.mubr.f32.gmra.mrb[0].mxu0 %v923
      %v1040 = vpop.f32.mrb[0].mxu0
      %v1041 = vadd.f32 0.0, %v1040
      %v1042 = vpop.f32.mrb[0].mxu0
      %1043 = vmatprep.mubr.f32.mxu0 0.0
      %1044 = vmatmul.mubr.f32.gmra.mrb[0].mxu0 %v925
      %v1045 = vpop.f32.mrb[0].mxu0
      %v1046 = vadd.f32 0.0, %v1045
      %v1047 = vpop.f32.mrb[0].mxu0
      %1048 = vmatprep.mubr.f32.mxu0 0.0
      %1049 = vmatmul.mubr.f32.gmra.mrb[0].mxu0 %v927
      %v1050 = vpop.f32.mrb[0].mxu0
      %v1051 = vpop.f32.mrb[0].mxu0
      %1052 = vdwg.mxu0
      %v1054 = vsel %vm298, %v221, 0
      %1056 = vmatprep.subr.mxu0 0.0
      %1057 = vmatpush1.msra.mxu0 %v1054
      %1058 = vmatprep.subr.mxu0 0.0
      %1059 = vmatpush1.msra.mxu0 0.0
      %1060 = vmatprep.subr.mxu0 0.0
      %1061 = vmatpush1.msra.mxu0 0.0
      %1062 = vmatprep.subr.mxu0 0.0
      %1063 = vmatpush1.msra.mxu0 0.0
      %1064 = vmatprep.subr.mxu0 0.0
      %1065 = vmatpush1.msra.mxu0 0.0
      %1066 = vmatprep.subr.mxu0 0.0
      %1067 = vmatpush1.msra.mxu0 0.0
      %1068 = vmatprep.subr.mxu0 0.0
      %1069 = vmatpush1.msra.mxu0 0.0
      %1070 = vmatprep.subr.mxu0 0.0
      %1071 = vmatpush1.msra.mxu0 0.0
      %1072 = vmatprep.subr.mxu0 0.0
      %1073 = vmatpush1.msra.mxu0 0.0
      %1074 = vmatprep.subr.mxu0 0.0
      %1075 = vmatpush1.msra.mxu0 0.0
      %1076 = vmatprep.subr.mxu0 0.0
      %1077 = vmatpush1.msra.mxu0 0.0
      %1078 = vmatprep.subr.mxu0 0.0
      %1079 = vmatpush1.msra.mxu0 0.0
      %1080 = vmatprep.subr.mxu0 0.0
      %1081 = vmatpush1.msra.mxu0 0.0
      %1082 = vmatprep.subr.mxu0 0.0
      %1083 = vmatpush1.msra.mxu0 0.0
      %1084 = vmatprep.subr.mxu0 0.0
      %1085 = vmatpush1.msra.mxu0 0.0
      %1086 = vmatprep.subr.mxu0 0.0
      %1087 = vmatpush1.msra.mxu0 0.0
      %1088 = vmatprep.subr.mxu0 0.0
      %1089 = vmatpush1.msra.mxu0 0.0
      %1090 = vmatprep.subr.mxu0 0.0
      %1091 = vmatpush1.msra.mxu0 0.0
      %1092 = vmatprep.subr.mxu0 0.0
      %1093 = vmatpush1.msra.mxu0 0.0
      %1094 = vmatprep.subr.mxu0 0.0
      %1095 = vmatpush1.msra.mxu0 0.0
      %1096 = vmatprep.subr.mxu0 0.0
      %1097 = vmatpush1.msra.mxu0 0.0
      %1098 = vmatprep.subr.mxu0 0.0
      %1099 = vmatpush1.msra.mxu0 0.0
      %1100 = vmatprep.subr.mxu0 0.0
      %1101 = vmatpush1.msra.mxu0 0.0
      %1102 = vmatprep.subr.mxu0 0.0
      %1103 = vmatpush1.msra.mxu0 0.0
      %1104 = vmatprep.subr.mxu0 0.0
      %1105 = vmatpush1.msra.mxu0 0.0
      %1106 = vmatprep.subr.mxu0 0.0
      %1107 = vmatpush1.msra.mxu0 0.0
      %1108 = vmatprep.subr.mxu0 0.0
      %1109 = vmatpush1.msra.mxu0 0.0
      %1110 = vmatprep.subr.mxu0 0.0
      %1111 = vmatpush1.msra.mxu0 0.0
      %1112 = vmatprep.subr.mxu0 0.0
      %1113 = vmatpush1.msra.mxu0 0.0
      %1114 = vmatprep.subr.mxu0 0.0
      %1115 = vmatpush1.msra.mxu0 0.0
      %1116 = vmatprep.subr.mxu0 0.0
      %1117 = vmatpush1.msra.mxu0 0.0
      %1118 = vmatprep.subr.mxu0 0.0
      %1119 = vmatpush1.msra.mxu0 0.0
      %1120 = vmatprep.mubr.f32.mxu0 0.0
      %1121 = vmatmul.mubr.f32.gmra.mrb[0].mxu0 %v274
      %v1122 = vpop.f32.mrb[0].mxu0
      %v1123 = vadd.f32 %v999, %v1122
      %v1124 = vpop.f32.mrb[0].mxu0
      %1125 = vmatprep.mubr.f32.mxu0 0.0
      %1126 = vmatmul.mubr.f32.gmra.mrb[0].mxu0 %v276
      %v1127 = vpop.f32.mrb[0].mxu0
      %v1128 = vadd.f32 %v1004, %v1127
      %v1129 = vpop.f32.mrb[0].mxu0
      %1130 = vmatprep.mubr.f32.mxu0 0.0
      %1131 = vmatmul.mubr.f32.gmra.mrb[0].mxu0 %v278
      %v1132 = vpop.f32.mrb[0].mxu0
      %v1133 = vpop.f32.mrb[0].mxu0
      %1134 = vmatprep.mubr.f32.mxu0 0.0
      %1135 = vmatmul.mubr.f32.gmra.mrb[0].mxu0 %v280
      %v1136 = vpop.f32.mrb[0].mxu0
      %v1137 = vadd.f32 %v1013, %v1136
      %v1138 = vpop.f32.mrb[0].mxu0
      %1139 = vmatprep.mubr.f32.mxu0 0.0
      %1140 = vmatmul.mubr.f32.gmra.mrb[0].mxu0 %v282
      %v1141 = vpop.f32.mrb[0].mxu0
      %v1142 = vadd.f32 %v1018, %v1141
      %v1143 = vpop.f32.mrb[0].mxu0
      %1144 = vmatprep.mubr.f32.mxu0 0.0
      %1145 = vmatmul.mubr.f32.gmra.mrb[0].mxu0 %v284
      %v1146 = vpop.f32.mrb[0].mxu0
      %v1147 = vpop.f32.mrb[0].mxu0
      %1148 = vmatprep.mubr.f32.mxu0 0.0
      %1149 = vmatmul.mubr.f32.gmra.mrb[0].mxu0 %v286
      %v1150 = vpop.f32.mrb[0].mxu0
      %v1151 = vadd.f32 %v1027, %v1150
      %v1152 = vpop.f32.mrb[0].mxu0
      %1153 = vmatprep.mubr.f32.mxu0 0.0
      %1154 = vmatmul.mubr.f32.gmra.mrb[0].mxu0 %v288
      %v1155 = vpop.f32.mrb[0].mxu0
      %v1156 = vadd.f32 %v1032, %v1155
      %v1157 = vpop.f32.mrb[0].mxu0
      %1158 = vmatprep.mubr.f32.mxu0 0.0
      %1159 = vmatmul.mubr.f32.gmra.mrb[0].mxu0 %v290
      %v1160 = vpop.f32.mrb[0].mxu0
      %v1161 = vpop.f32.mrb[0].mxu0
      %1162 = vmatprep.mubr.f32.mxu0 0.0
      %1163 = vmatmul.mubr.f32.gmra.mrb[0].mxu0 %v292
      %v1164 = vpop.f32.mrb[0].mxu0
      %v1165 = vadd.f32 %v1041, %v1164
      %v1166 = vpop.f32.mrb[0].mxu0
      %1167 = vmatprep.mubr.f32.mxu0 0.0
      %1168 = vmatmul.mubr.f32.gmra.mrb[0].mxu0 %v294
      %v1169 = vpop.f32.mrb[0].mxu0
      %v1170 = vadd.f32 %v1046, %v1169
      %v1171 = vpop.f32.mrb[0].mxu0
      %1172 = vmatprep.mubr.f32.mxu0 0.0
      %1173 = vmatmul.mubr.f32.gmra.mrb[0].mxu0 %v296
      %v1174 = vpop.f32.mrb[0].mxu0
      %v1175 = vpop.f32.mrb[0].mxu0
      %1176 = vdwg.mxu0
      %v1178 = vsel %vm298, %v223, 0
      %1180 = vmatprep.subr.mxu0 0.0
      %1181 = vmatpush1.msra.mxu0 %v1178
      %1182 = vmatprep.subr.mxu0 0.0
      %1183 = vmatpush1.msra.mxu0 0.0
      %1184 = vmatprep.subr.mxu0 0.0
      %1185 = vmatpush1.msra.mxu0 0.0
      %1186 = vmatprep.subr.mxu0 0.0
      %1187 = vmatpush1.msra.mxu0 0.0
      %1188 = vmatprep.subr.mxu0 0.0
      %1189 = vmatpush1.msra.mxu0 0.0
      %1190 = vmatprep.subr.mxu0 0.0
      %1191 = vmatpush1.msra.mxu0 0.0
      %1192 = vmatprep.subr.mxu0 0.0
      %1193 = vmatpush1.msra.mxu0 0.0
      %1194 = vmatprep.subr.mxu0 0.0
      %1195 = vmatpush1.msra.mxu0 0.0
      %1196 = vmatprep.subr.mxu0 0.0
      %1197 = vmatpush1.msra.mxu0 0.0
      %1198 = vmatprep.subr.mxu0 0.0
      %1199 = vmatpush1.msra.mxu0 0.0
      %1200 = vmatprep.subr.mxu0 0.0
      %1201 = vmatpush1.msra.mxu0 0.0
      %1202 = vmatprep.subr.mxu0 0.0
      %1203 = vmatpush1.msra.mxu0 0.0
      %1204 = vmatprep.subr.mxu0 0.0
      %1205 = vmatpush1.msra.mxu0 0.0
      %1206 = vmatprep.subr.mxu0 0.0
      %1207 = vmatpush1.msra.mxu0 0.0
      %1208 = vmatprep.subr.mxu0 0.0
      %1209 = vmatpush1.msra.mxu0 0.0
      %1210 = vmatprep.subr.mxu0 0.0
      %1211 = vmatpush1.msra.mxu0 0.0
      %1212 = vmatprep.subr.mxu0 0.0
      %1213 = vmatpush1.msra.mxu0 0.0
      %1214 = vmatprep.subr.mxu0 0.0
      %1215 = vmatpush1.msra.mxu0 0.0
      %1216 = vmatprep.subr.mxu0 0.0
      %1217 = vmatpush1.msra.mxu0 0.0
      %1218 = vmatprep.subr.mxu0 0.0
      %1219 = vmatpush1.msra.mxu0 0.0
      %1220 = vmatprep.subr.mxu0 0.0
      %1221 = vmatpush1.msra.mxu0 0.0
      %1222 = vmatprep.subr.mxu0 0.0
      %1223 = vmatpush1.msra.mxu0 0.0
      %1224 = vmatprep.subr.mxu0 0.0
      %1225 = vmatpush1.msra.mxu0 0.0
      %1226 = vmatprep.subr.mxu0 0.0
      %1227 = vmatpush1.msra.mxu0 0.0
      %1228 = vmatprep.subr.mxu0 0.0
      %1229 = vmatpush1.msra.mxu0 0.0
      %1230 = vmatprep.subr.mxu0 0.0
      %1231 = vmatpush1.msra.mxu0 0.0
      %1232 = vmatprep.subr.mxu0 0.0
      %1233 = vmatpush1.msra.mxu0 0.0
      %1234 = vmatprep.subr.mxu0 0.0
      %1235 = vmatpush1.msra.mxu0 0.0
      %1236 = vmatprep.subr.mxu0 0.0
      %1237 = vmatpush1.msra.mxu0 0.0
      %1238 = vmatprep.subr.mxu0 0.0
      %1239 = vmatpush1.msra.mxu0 0.0
      %1240 = vmatprep.subr.mxu0 0.0
      %1241 = vmatpush1.msra.mxu0 0.0
      %1242 = vmatprep.subr.mxu0 0.0
      %1243 = vmatpush1.msra.mxu0 0.0
      %1244 = vmatprep.mubr.f32.mxu0 0.0
      %1245 = vmatmul.mubr.f32.gmra.mrb[0].mxu0 %v280
      %v1246 = vpop.f32.mrb[0].mxu0
      %v1247 = vadd.f32 0.0, %v1246
      %v1248 = vpop.f32.mrb[0].mxu0
      %1249 = vmatprep.mubr.f32.mxu0 0.0
      %1250 = vmatmul.mubr.f32.gmra.mrb[0].mxu0 %v282
      %v1251 = vpop.f32.mrb[0].mxu0
      %v1252 = vadd.f32 0.0, %v1251
      %v1253 = vpop.f32.mrb[0].mxu0
      %1254 = vmatprep.mubr.f32.mxu0 0.0
      %1255 = vmatmul.mubr.f32.gmra.mrb[0].mxu0 %v284
      %v1256 = vpop.f32.mrb[0].mxu0
      %v1257 = vpop.f32.mrb[0].mxu0
      %1258 = vmatprep.mubr.f32.mxu0 0.0
      %1259 = vmatmul.mubr.f32.gmra.mrb[0].mxu0 %v286
      %v1260 = vpop.f32.mrb[0].mxu0
      %v1261 = vadd.f32 0.0, %v1260
      %v1262 = vpop.f32.mrb[0].mxu0
      %1263 = vmatprep.mubr.f32.mxu0 0.0
      %1264 = vmatmul.mubr.f32.gmra.mrb[0].mxu0 %v288
      %v1265 = vpop.f32.mrb[0].mxu0
      %v1266 = vadd.f32 0.0, %v1265
      %v1267 = vpop.f32.mrb[0].mxu0
      %1268 = vmatprep.mubr.f32.mxu0 0.0
      %1269 = vmatmul.mubr.f32.gmra.mrb[0].mxu0 %v290
      %v1270 = vpop.f32.mrb[0].mxu0
      %v1271 = vpop.f32.mrb[0].mxu0
      %1272 = vmatprep.mubr.f32.mxu0 0.0
      %1273 = vmatmul.mubr.f32.gmra.mrb[0].mxu0 %v292
      %v1274 = vpop.f32.mrb[0].mxu0
      %v1275 = vadd.f32 0.0, %v1274
      %v1276 = vpop.f32.mrb[0].mxu0
      %1277 = vmatprep.mubr.f32.mxu0 0.0
      %1278 = vmatmul.mubr.f32.gmra.mrb[0].mxu0 %v294
      %v1279 = vpop.f32.mrb[0].mxu0
      %v1280 = vadd.f32 0.0, %v1279
      %v1281 = vpop.f32.mrb[0].mxu0
      %1282 = vmatprep.mubr.f32.mxu0 0.0
      %1283 = vmatmul.mubr.f32.gmra.mrb[0].mxu0 %v296
      %v1284 = vpop.f32.mrb[0].mxu0
      %v1285 = vpop.f32.mrb[0].mxu0
      %1286 = vmatprep.mubr.f32.mxu0 0.0
      %1287 = vmatmul.mubr.f32.gmra.mrb[0].mxu0 %v718
      %v1288 = vpop.f32.mrb[0].mxu0
      %v1289 = vadd.f32 0.0, %v1288
      %v1290 = vpop.f32.mrb[0].mxu0
      %1291 = vmatprep.mubr.f32.mxu0 0.0
      %1292 = vmatmul.mubr.f32.gmra.mrb[0].mxu0 %v720
      %v1293 = vpop.f32.mrb[0].mxu0
      %v1294 = vadd.f32 0.0, %v1293
      %v1295 = vpop.f32.mrb[0].mxu0
      %1296 = vmatprep.mubr.f32.mxu0 0.0
      %1297 = vmatmul.mubr.f32.gmra.mrb[0].mxu0 %v722
      %v1298 = vpop.f32.mrb[0].mxu0
      %v1299 = vpop.f32.mrb[0].mxu0
      %1300 = vdwg.mxu0
      %v1301 = vadd.f32 %v1123, %v1247
      %v1302 = vadd.f32 %v1128, %v1252
      %v1303 = vadd.f32 %v1137, %v1261
      %v1304 = vadd.f32 %v1142, %v1266
      %v1305 = vadd.f32 %v1151, %v1275
      %v1306 = vadd.f32 %v1156, %v1280
      %v1307 = vadd.f32 %v1165, %v1289
      %v1308 = vadd.f32 %v1170, %v1294
      %v1309 = vrot.slane %v212, 2
      %v1310 = vsel %vm879, %v903, %v1309
      %v1311 = vrot.slane %v213, 2
      %v1312 = vsel %vm879, %v1309, %v1311
      %v1313 = vrot.slane %v214, 2
      %v1314 = vsel %vm879, %v1311, %v1313
      %v1315 = vsel %vm273, %v1310, 0
      %v1317 = vsel %vm273, %v1312, 0
      %v1319 = vsel %vm273, %v1314, 0
      %v1322 = vsel %vm298, %v224, 0
      %1324 = vmatprep.subr.mxu0 0.0
      %1325 = vmatpush1.msra.mxu0 %v1322
      %1326 = vmatprep.subr.mxu0 0.0
      %1327 = vmatpush1.msra.mxu0 0.0
      %1328 = vmatprep.subr.mxu0 0.0
      %1329 = vmatpush1.msra.mxu0 0.0
      %1330 = vmatprep.subr.mxu0 0.0
      %1331 = vmatpush1.msra.mxu0 0.0
      %1332 = vmatprep.subr.mxu0 0.0
      %1333 = vmatpush1.msra.mxu0 0.0
      %1334 = vmatprep.subr.mxu0 0.0
      %1335 = vmatpush1.msra.mxu0 0.0
      %1336 = vmatprep.subr.mxu0 0.0
      %1337 = vmatpush1.msra.mxu0 0.0
      %1338 = vmatprep.subr.mxu0 0.0
      %1339 = vmatpush1.msra.mxu0 0.0
      %1340 = vmatprep.subr.mxu0 0.0
      %1341 = vmatpush1.msra.mxu0 0.0
      %1342 = vmatprep.subr.mxu0 0.0
      %1343 = vmatpush1.msra.mxu0 0.0
      %1344 = vmatprep.subr.mxu0 0.0
      %1345 = vmatpush1.msra.mxu0 0.0
      %1346 = vmatprep.subr.mxu0 0.0
      %1347 = vmatpush1.msra.mxu0 0.0
      %1348 = vmatprep.subr.mxu0 0.0
      %1349 = vmatpush1.msra.mxu0 0.0
      %1350 = vmatprep.subr.mxu0 0.0
      %1351 = vmatpush1.msra.mxu0 0.0
      %1352 = vmatprep.subr.mxu0 0.0
      %1353 = vmatpush1.msra.mxu0 0.0
      %1354 = vmatprep.subr.mxu0 0.0
      %1355 = vmatpush1.msra.mxu0 0.0
      %1356 = vmatprep.subr.mxu0 0.0
      %1357 = vmatpush1.msra.mxu0 0.0
      %1358 = vmatprep.subr.mxu0 0.0
      %1359 = vmatpush1.msra.mxu0 0.0
      %1360 = vmatprep.subr.mxu0 0.0
      %1361 = vmatpush1.msra.mxu0 0.0
      %1362 = vmatprep.subr.mxu0 0.0
      %1363 = vmatpush1.msra.mxu0 0.0
      %1364 = vmatprep.subr.mxu0 0.0
      %1365 = vmatpush1.msra.mxu0 0.0
      %1366 = vmatprep.subr.mxu0 0.0
      %1367 = vmatpush1.msra.mxu0 0.0
      %1368 = vmatprep.subr.mxu0 0.0
      %1369 = vmatpush1.msra.mxu0 0.0
      %1370 = vmatprep.subr.mxu0 0.0
      %1371 = vmatpush1.msra.mxu0 0.0
      %1372 = vmatprep.subr.mxu0 0.0
      %1373 = vmatpush1.msra.mxu0 0.0
      %1374 = vmatprep.subr.mxu0 0.0
      %1375 = vmatpush1.msra.mxu0 0.0
      %1376 = vmatprep.subr.mxu0 0.0
      %1377 = vmatpush1.msra.mxu0 0.0
      %1378 = vmatprep.subr.mxu0 0.0
      %1379 = vmatpush1.msra.mxu0 0.0
      %1380 = vmatprep.subr.mxu0 0.0
      %1381 = vmatpush1.msra.mxu0 0.0
      %1382 = vmatprep.subr.mxu0 0.0
      %1383 = vmatpush1.msra.mxu0 0.0
      %1384 = vmatprep.subr.mxu0 0.0
      %1385 = vmatpush1.msra.mxu0 0.0
      %1386 = vmatprep.subr.mxu0 0.0
      %1387 = vmatpush1.msra.mxu0 0.0
      %1388 = vmatprep.mubr.f32.mxu0 0.0
      %1389 = vmatmul.mubr.f32.gmra.mrb[0].mxu0 %v911
      %v1390 = vpop.f32.mrb[0].mxu0
      %v1391 = vadd.f32 0.0, %v1390
      %v1392 = vpop.f32.mrb[0].mxu0
      %1393 = vmatprep.mubr.f32.mxu0 0.0
      %1394 = vmatmul.mubr.f32.gmra.mrb[0].mxu0 %v913
      %v1395 = vpop.f32.mrb[0].mxu0
      %v1396 = vadd.f32 0.0, %v1395
      %v1397 = vpop.f32.mrb[0].mxu0
      %1398 = vmatprep.mubr.f32.mxu0 0.0
      %1399 = vmatmul.mubr.f32.gmra.mrb[0].mxu0 %v915
      %v1400 = vpop.f32.mrb[0].mxu0
      %v1401 = vpop.f32.mrb[0].mxu0
      %1402 = vmatprep.mubr.f32.mxu0 0.0
      %1403 = vmatmul.mubr.f32.gmra.mrb[0].mxu0 %v917
      %v1404 = vpop.f32.mrb[0].mxu0
      %v1405 = vadd.f32 0.0, %v1404
      %v1406 = vpop.f32.mrb[0].mxu0
      %1407 = vmatprep.mubr.f32.mxu0 0.0
      %1408 = vmatmul.mubr.f32.gmra.mrb[0].mxu0 %v919
      %v1409 = vpop.f32.mrb[0].mxu0
      %v1410 = vadd.f32 0.0, %v1409
      %v1411 = vpop.f32.mrb[0].mxu0
      %1412 = vmatprep.mubr.f32.mxu0 0.0
      %1413 = vmatmul.mubr.f32.gmra.mrb[0].mxu0 %v921
      %v1414 = vpop.f32.mrb[0].mxu0
      %v1415 = vpop.f32.mrb[0].mxu0
      %1416 = vmatprep.mubr.f32.mxu0 0.0
      %1417 = vmatmul.mubr.f32.gmra.mrb[0].mxu0 %v923
      %v1418 = vpop.f32.mrb[0].mxu0
      %v1419 = vadd.f32 0.0, %v1418
      %v1420 = vpop.f32.mrb[0].mxu0
      %1421 = vmatprep.mubr.f32.mxu0 0.0
      %1422 = vmatmul.mubr.f32.gmra.mrb[0].mxu0 %v925
      %v1423 = vpop.f32.mrb[0].mxu0
      %v1424 = vadd.f32 0.0, %v1423
      %v1425 = vpop.f32.mrb[0].mxu0
      %1426 = vmatprep.mubr.f32.mxu0 0.0
      %1427 = vmatmul.mubr.f32.gmra.mrb[0].mxu0 %v927
      %v1428 = vpop.f32.mrb[0].mxu0
      %v1429 = vpop.f32.mrb[0].mxu0
      %1430 = vmatprep.mubr.f32.mxu0 0.0
      %1431 = vmatmul.mubr.f32.gmra.mrb[0].mxu0 %v1315
      %v1432 = vpop.f32.mrb[0].mxu0
      %v1433 = vadd.f32 0.0, %v1432
      %v1434 = vpop.f32.mrb[0].mxu0
      %1435 = vmatprep.mubr.f32.mxu0 0.0
      %1436 = vmatmul.mubr.f32.gmra.mrb[0].mxu0 %v1317
      %v1437 = vpop.f32.mrb[0].mxu0
      %v1438 = vadd.f32 0.0, %v1437
      %v1439 = vpop.f32.mrb[0].mxu0
      %1440 = vmatprep.mubr.f32.mxu0 0.0
      %1441 = vmatmul.mubr.f32.gmra.mrb[0].mxu0 %v1319
      %v1442 = vpop.f32.mrb[0].mxu0
      %v1443 = vpop.f32.mrb[0].mxu0
      %1444 = vdwg.mxu0
      %v1445 = vadd.f32 %v1301, %v1391
      %v1446 = vadd.f32 %v1302, %v1396
      %v1447 = vadd.f32 %v1303, %v1405
      %v1448 = vadd.f32 %v1304, %v1410
      %v1449 = vadd.f32 %v1305, %v1419
      %v1450 = vadd.f32 %v1306, %v1424
      %v1451 = vadd.f32 %v1307, %v1433
      %v1452 = vadd.f32 %v1308, %v1438
      %v1453 = vadd.f32 %v1445, %v860
      %v1454 = vadd.f32 %v1446, %v860
      %v1455 = vadd.f32 %v1447, %v860
      %v1456 = vadd.f32 %v1448, %v860
      %v1457 = vadd.f32 %v1449, %v860
      %v1458 = vadd.f32 %v1450, %v860
      %v1459 = vadd.f32 %v1451, %v860
      %v1460 = vadd.f32 %v1452, %v860
      %s1461 = scalar_lea.vmem %s194, 16
      %1462 = vst.msk [vmem:[%s1461] sm:$0xff] %vm870, %v1453
      %1463 = vst.msk [vmem:[%s1461 + $0x8] sm:$0xff] %vm870, %v1454
      %1464 = vst.msk [vmem:[%s1461 + $0x40] sm:$0xff] %vm870, %v1455
      %1465 = vst.msk [vmem:[%s1461 + $0x48] sm:$0xff] %vm870, %v1456
      %1466 = vst.msk [vmem:[%s1461 + $0x80] sm:$0xff] %vm870, %v1457
      %1467 = vst.msk [vmem:[%s1461 + $0x88] sm:$0xff] %vm870, %v1458
      %1468 = vst.msk [vmem:[%s1461 + $0xc0] sm:$0xff] %vm870, %v1459
      %1469 = vst.msk [vmem:[%s1461 + $0xc8] sm:$0xff] %vm870, %v1460
      %v1471 = vsel %vm298, %v226, 0
      %1473 = vmatprep.subr.mxu0 0.0
      %1474 = vmatpush1.msra.mxu0 %v1471
      %1475 = vmatprep.subr.mxu0 0.0
      %1476 = vmatpush1.msra.mxu0 0.0
      %1477 = vmatprep.subr.mxu0 0.0
      %1478 = vmatpush1.msra.mxu0 0.0
      %1479 = vmatprep.subr.mxu0 0.0
      %1480 = vmatpush1.msra.mxu0 0.0
      %1481 = vmatprep.subr.mxu0 0.0
      %1482 = vmatpush1.msra.mxu0 0.0
      %1483 = vmatprep.subr.mxu0 0.0
      %1484 = vmatpush1.msra.mxu0 0.0
      %1485 = vmatprep.subr.mxu0 0.0
      %1486 = vmatpush1.msra.mxu0 0.0
      %1487 = vmatprep.subr.mxu0 0.0
      %1488 = vmatpush1.msra.mxu0 0.0
      %1489 = vmatprep.subr.mxu0 0.0
      %1490 = vmatpush1.msra.mxu0 0.0
      %1491 = vmatprep.subr.mxu0 0.0
      %1492 = vmatpush1.msra.mxu0 0.0
      %1493 = vmatprep.subr.mxu0 0.0
      %1494 = vmatpush1.msra.mxu0 0.0
      %1495 = vmatprep.subr.mxu0 0.0
      %1496 = vmatpush1.msra.mxu0 0.0
      %1497 = vmatprep.subr.mxu0 0.0
      %1498 = vmatpush1.msra.mxu0 0.0
      %1499 = vmatprep.subr.mxu0 0.0
      %1500 = vmatpush1.msra.mxu0 0.0
      %1501 = vmatprep.subr.mxu0 0.0
      %1502 = vmatpush1.msra.mxu0 0.0
      %1503 = vmatprep.subr.mxu0 0.0
      %1504 = vmatpush1.msra.mxu0 0.0
      %1505 = vmatprep.subr.mxu0 0.0
      %1506 = vmatpush1.msra.mxu0 0.0
      %1507 = vmatprep.subr.mxu0 0.0
      %1508 = vmatpush1.msra.mxu0 0.0
      %1509 = vmatprep.subr.mxu0 0.0
      %1510 = vmatpush1.msra.mxu0 0.0
      %1511 = vmatprep.subr.mxu0 0.0
      %1512 = vmatpush1.msra.mxu0 0.0
      %1513 = vmatprep.subr.mxu0 0.0
      %1514 = vmatpush1.msra.mxu0 0.0
      %1515 = vmatprep.subr.mxu0 0.0
      %1516 = vmatpush1.msra.mxu0 0.0
      %1517 = vmatprep.subr.mxu0 0.0
      %1518 = vmatpush1.msra.mxu0 0.0
      %1519 = vmatprep.subr.mxu0 0.0
      %1520 = vmatpush1.msra.mxu0 0.0
      %1521 = vmatprep.subr.mxu0 0.0
      %1522 = vmatpush1.msra.mxu0 0.0
      %1523 = vmatprep.subr.mxu0 0.0
      %1524 = vmatpush1.msra.mxu0 0.0
      %1525 = vmatprep.subr.mxu0 0.0
      %1526 = vmatpush1.msra.mxu0 0.0
      %1527 = vmatprep.subr.mxu0 0.0
      %1528 = vmatpush1.msra.mxu0 0.0
      %1529 = vmatprep.subr.mxu0 0.0
      %1530 = vmatpush1.msra.mxu0 0.0
      %1531 = vmatprep.subr.mxu0 0.0
      %1532 = vmatpush1.msra.mxu0 0.0
      %1533 = vmatprep.subr.mxu0 0.0
      %1534 = vmatpush1.msra.mxu0 0.0
      %1535 = vmatprep.subr.mxu0 0.0
      %1536 = vmatpush1.msra.mxu0 0.0
      %1537 = vmatprep.mubr.f32.mxu0 0.0
      %1538 = vmatmul.mubr.f32.gmra.mrb[0].mxu0 %v280
      %v1539 = vpop.f32.mrb[0].mxu0
      %v1540 = vadd.f32 0.0, %v1539
      %v1541 = vpop.f32.mrb[0].mxu0
      %1542 = vmatprep.mubr.f32.mxu0 0.0
      %1543 = vmatmul.mubr.f32.gmra.mrb[0].mxu0 %v282
      %v1544 = vpop.f32.mrb[0].mxu0
      %v1545 = vadd.f32 0.0, %v1544
      %v1546 = vpop.f32.mrb[0].mxu0
      %1547 = vmatprep.mubr.f32.mxu0 0.0
      %1548 = vmatmul.mubr.f32.gmra.mrb[0].mxu0 %v284
      %v1549 = vpop.f32.mrb[0].mxu0
      %v1550 = vpop.f32.mrb[0].mxu0
      %1551 = vmatprep.mubr.f32.mxu0 0.0
      %1552 = vmatmul.mubr.f32.gmra.mrb[0].mxu0 %v286
      %v1553 = vpop.f32.mrb[0].mxu0
      %v1554 = vadd.f32 0.0, %v1553
      %v1555 = vpop.f32.mrb[0].mxu0
      %1556 = vmatprep.mubr.f32.mxu0 0.0
      %1557 = vmatmul.mubr.f32.gmra.mrb[0].mxu0 %v288
      %v1558 = vpop.f32.mrb[0].mxu0
      %v1559 = vadd.f32 0.0, %v1558
      %v1560 = vpop.f32.mrb[0].mxu0
      %1561 = vmatprep.mubr.f32.mxu0 0.0
      %1562 = vmatmul.mubr.f32.gmra.mrb[0].mxu0 %v290
      %v1563 = vpop.f32.mrb[0].mxu0
      %v1564 = vpop.f32.mrb[0].mxu0
      %1565 = vmatprep.mubr.f32.mxu0 0.0
      %1566 = vmatmul.mubr.f32.gmra.mrb[0].mxu0 %v292
      %v1567 = vpop.f32.mrb[0].mxu0
      %v1568 = vadd.f32 0.0, %v1567
      %v1569 = vpop.f32.mrb[0].mxu0
      %1570 = vmatprep.mubr.f32.mxu0 0.0
      %1571 = vmatmul.mubr.f32.gmra.mrb[0].mxu0 %v294
      %v1572 = vpop.f32.mrb[0].mxu0
      %v1573 = vadd.f32 0.0, %v1572
      %v1574 = vpop.f32.mrb[0].mxu0
      %1575 = vmatprep.mubr.f32.mxu0 0.0
      %1576 = vmatmul.mubr.f32.gmra.mrb[0].mxu0 %v296
      %v1577 = vpop.f32.mrb[0].mxu0
      %v1578 = vpop.f32.mrb[0].mxu0
      %1579 = vmatprep.mubr.f32.mxu0 0.0
      %1580 = vmatmul.mubr.f32.gmra.mrb[0].mxu0 %v718
      %v1581 = vpop.f32.mrb[0].mxu0
      %v1582 = vadd.f32 0.0, %v1581
      %v1583 = vpop.f32.mrb[0].mxu0
      %1584 = vmatprep.mubr.f32.mxu0 0.0
      %1585 = vmatmul.mubr.f32.gmra.mrb[0].mxu0 %v720
      %v1586 = vpop.f32.mrb[0].mxu0
      %v1587 = vadd.f32 0.0, %v1586
      %v1588 = vpop.f32.mrb[0].mxu0
      %1589 = vmatprep.mubr.f32.mxu0 0.0
      %1590 = vmatmul.mubr.f32.gmra.mrb[0].mxu0 %v722
      %v1591 = vpop.f32.mrb[0].mxu0
      %v1592 = vpop.f32.mrb[0].mxu0
      %1593 = vdwg.mxu0
      %v1595 = vsel %vm298, %v225, 0
      %1597 = vmatprep.subr.mxu0 0.0
      %1598 = vmatpush1.msra.mxu0 %v1595
      %1599 = vmatprep.subr.mxu0 0.0
      %1600 = vmatpush1.msra.mxu0 0.0
      %1601 = vmatprep.subr.mxu0 0.0
      %1602 = vmatpush1.msra.mxu0 0.0
      %1603 = vmatprep.subr.mxu0 0.0
      %1604 = vmatpush1.msra.mxu0 0.0
      %1605 = vmatprep.subr.mxu0 0.0
      %1606 = vmatpush1.msra.mxu0 0.0
      %1607 = vmatprep.subr.mxu0 0.0
      %1608 = vmatpush1.msra.mxu0 0.0
      %1609 = vmatprep.subr.mxu0 0.0
      %1610 = vmatpush1.msra.mxu0 0.0
      %1611 = vmatprep.subr.mxu0 0.0
      %1612 = vmatpush1.msra.mxu0 0.0
      %1613 = vmatprep.subr.mxu0 0.0
      %1614 = vmatpush1.msra.mxu0 0.0
      %1615 = vmatprep.subr.mxu0 0.0
      %1616 = vmatpush1.msra.mxu0 0.0
      %1617 = vmatprep.subr.mxu0 0.0
      %1618 = vmatpush1.msra.mxu0 0.0
      %1619 = vmatprep.subr.mxu0 0.0
      %1620 = vmatpush1.msra.mxu0 0.0
      %1621 = vmatprep.subr.mxu0 0.0
      %1622 = vmatpush1.msra.mxu0 0.0
      %1623 = vmatprep.subr.mxu0 0.0
      %1624 = vmatpush1.msra.mxu0 0.0
      %1625 = vmatprep.subr.mxu0 0.0
      %1626 = vmatpush1.msra.mxu0 0.0
      %1627 = vmatprep.subr.mxu0 0.0
      %1628 = vmatpush1.msra.mxu0 0.0
      %1629 = vmatprep.subr.mxu0 0.0
      %1630 = vmatpush1.msra.mxu0 0.0
      %1631 = vmatprep.subr.mxu0 0.0
      %1632 = vmatpush1.msra.mxu0 0.0
      %1633 = vmatprep.subr.mxu0 0.0
      %1634 = vmatpush1.msra.mxu0 0.0
      %1635 = vmatprep.subr.mxu0 0.0
      %1636 = vmatpush1.msra.mxu0 0.0
      %1637 = vmatprep.subr.mxu0 0.0
      %1638 = vmatpush1.msra.mxu0 0.0
      %1639 = vmatprep.subr.mxu0 0.0
      %1640 = vmatpush1.msra.mxu0 0.0
      %1641 = vmatprep.subr.mxu0 0.0
      %1642 = vmatpush1.msra.mxu0 0.0
      %1643 = vmatprep.subr.mxu0 0.0
      %1644 = vmatpush1.msra.mxu0 0.0
      %1645 = vmatprep.subr.mxu0 0.0
      %1646 = vmatpush1.msra.mxu0 0.0
      %1647 = vmatprep.subr.mxu0 0.0
      %1648 = vmatpush1.msra.mxu0 0.0
      %1649 = vmatprep.subr.mxu0 0.0
      %1650 = vmatpush1.msra.mxu0 0.0
      %1651 = vmatprep.subr.mxu0 0.0
      %1652 = vmatpush1.msra.mxu0 0.0
      %1653 = vmatprep.subr.mxu0 0.0
      %1654 = vmatpush1.msra.mxu0 0.0
      %1655 = vmatprep.subr.mxu0 0.0
      %1656 = vmatpush1.msra.mxu0 0.0
      %1657 = vmatprep.subr.mxu0 0.0
      %1658 = vmatpush1.msra.mxu0 0.0
      %1659 = vmatprep.subr.mxu0 0.0
      %1660 = vmatpush1.msra.mxu0 0.0
      %1661 = vmatprep.mubr.f32.mxu0 0.0
      %1662 = vmatmul.mubr.f32.gmra.mrb[0].mxu0 %v429
      %v1663 = vpop.f32.mrb[0].mxu0
      %v1664 = vadd.f32 %v1540, %v1663
      %v1665 = vpop.f32.mrb[0].mxu0
      %1666 = vmatprep.mubr.f32.mxu0 0.0
      %1667 = vmatmul.mubr.f32.gmra.mrb[0].mxu0 %v431
      %v1668 = vpop.f32.mrb[0].mxu0
      %v1669 = vadd.f32 %v1545, %v1668
      %v1670 = vpop.f32.mrb[0].mxu0
      %1671 = vmatprep.mubr.f32.mxu0 0.0
      %1672 = vmatmul.mubr.f32.gmra.mrb[0].mxu0 %v433
      %v1673 = vpop.f32.mrb[0].mxu0
      %v1674 = vpop.f32.mrb[0].mxu0
      %1675 = vmatprep.mubr.f32.mxu0 0.0
      %1676 = vmatmul.mubr.f32.gmra.mrb[0].mxu0 %v435
      %v1677 = vpop.f32.mrb[0].mxu0
      %v1678 = vadd.f32 %v1554, %v1677
      %v1679 = vpop.f32.mrb[0].mxu0
      %1680 = vmatprep.mubr.f32.mxu0 0.0
      %1681 = vmatmul.mubr.f32.gmra.mrb[0].mxu0 %v437
      %v1682 = vpop.f32.mrb[0].mxu0
      %v1683 = vadd.f32 %v1559, %v1682
      %v1684 = vpop.f32.mrb[0].mxu0
      %1685 = vmatprep.mubr.f32.mxu0 0.0
      %1686 = vmatmul.mubr.f32.gmra.mrb[0].mxu0 %v439
      %v1687 = vpop.f32.mrb[0].mxu0
      %v1688 = vpop.f32.mrb[0].mxu0
      %1689 = vmatprep.mubr.f32.mxu0 0.0
      %1690 = vmatmul.mubr.f32.gmra.mrb[0].mxu0 %v441
      %v1691 = vpop.f32.mrb[0].mxu0
      %v1692 = vadd.f32 %v1568, %v1691
      %v1693 = vpop.f32.mrb[0].mxu0
      %1694 = vmatprep.mubr.f32.mxu0 0.0
      %1695 = vmatmul.mubr.f32.gmra.mrb[0].mxu0 %v443
      %v1696 = vpop.f32.mrb[0].mxu0
      %v1697 = vadd.f32 %v1573, %v1696
      %v1698 = vpop.f32.mrb[0].mxu0
      %1699 = vmatprep.mubr.f32.mxu0 0.0
      %1700 = vmatmul.mubr.f32.gmra.mrb[0].mxu0 %v445
      %v1701 = vpop.f32.mrb[0].mxu0
      %v1702 = vpop.f32.mrb[0].mxu0
      %1703 = vmatprep.mubr.f32.mxu0 0.0
      %1704 = vmatmul.mubr.f32.gmra.mrb[0].mxu0 %v571
      %v1705 = vpop.f32.mrb[0].mxu0
      %v1706 = vadd.f32 %v1582, %v1705
      %v1707 = vpop.f32.mrb[0].mxu0
      %1708 = vmatprep.mubr.f32.mxu0 0.0
      %1709 = vmatmul.mubr.f32.gmra.mrb[0].mxu0 %v574
      %v1710 = vpop.f32.mrb[0].mxu0
      %v1711 = vadd.f32 %v1587, %v1710
      %v1712 = vpop.f32.mrb[0].mxu0
      %1713 = vmatprep.mubr.f32.mxu0 0.0
      %1714 = vmatmul.mubr.f32.gmra.mrb[0].mxu0 %v577
      %v1715 = vpop.f32.mrb[0].mxu0
      %v1716 = vpop.f32.mrb[0].mxu0
      %1717 = vdwg.mxu0
      %v1718 = vsel %vm273, %v214, 0
      %v1721 = vsel %vm273, %v215, 0
      %v1724 = vsel %vm273, %v216, 0
      %v1727 = vsel %vm298, %v227, 0
      %1729 = vmatprep.subr.mxu0 0.0
      %1730 = vmatpush1.msra.mxu0 %v1727
      %1731 = vmatprep.subr.mxu0 0.0
      %1732 = vmatpush1.msra.mxu0 0.0
      %1733 = vmatprep.subr.mxu0 0.0
      %1734 = vmatpush1.msra.mxu0 0.0
      %1735 = vmatprep.subr.mxu0 0.0
      %1736 = vmatpush1.msra.mxu0 0.0
      %1737 = vmatprep.subr.mxu0 0.0
      %1738 = vmatpush1.msra.mxu0 0.0
      %1739 = vmatprep.subr.mxu0 0.0
      %1740 = vmatpush1.msra.mxu0 0.0
      %1741 = vmatprep.subr.mxu0 0.0
      %1742 = vmatpush1.msra.mxu0 0.0
      %1743 = vmatprep.subr.mxu0 0.0
      %1744 = vmatpush1.msra.mxu0 0.0
      %1745 = vmatprep.subr.mxu0 0.0
      %1746 = vmatpush1.msra.mxu0 0.0
      %1747 = vmatprep.subr.mxu0 0.0
      %1748 = vmatpush1.msra.mxu0 0.0
      %1749 = vmatprep.subr.mxu0 0.0
      %1750 = vmatpush1.msra.mxu0 0.0
      %1751 = vmatprep.subr.mxu0 0.0
      %1752 = vmatpush1.msra.mxu0 0.0
      %1753 = vmatprep.subr.mxu0 0.0
      %1754 = vmatpush1.msra.mxu0 0.0
      %1755 = vmatprep.subr.mxu0 0.0
      %1756 = vmatpush1.msra.mxu0 0.0
      %1757 = vmatprep.subr.mxu0 0.0
      %1758 = vmatpush1.msra.mxu0 0.0
      %1759 = vmatprep.subr.mxu0 0.0
      %1760 = vmatpush1.msra.mxu0 0.0
      %1761 = vmatprep.subr.mxu0 0.0
      %1762 = vmatpush1.msra.mxu0 0.0
      %1763 = vmatprep.subr.mxu0 0.0
      %1764 = vmatpush1.msra.mxu0 0.0
      %1765 = vmatprep.subr.mxu0 0.0
      %1766 = vmatpush1.msra.mxu0 0.0
      %1767 = vmatprep.subr.mxu0 0.0
      %1768 = vmatpush1.msra.mxu0 0.0
      %1769 = vmatprep.subr.mxu0 0.0
      %1770 = vmatpush1.msra.mxu0 0.0
      %1771 = vmatprep.subr.mxu0 0.0
      %1772 = vmatpush1.msra.mxu0 0.0
      %1773 = vmatprep.subr.mxu0 0.0
      %1774 = vmatpush1.msra.mxu0 0.0
      %1775 = vmatprep.subr.mxu0 0.0
      %1776 = vmatpush1.msra.mxu0 0.0
      %1777 = vmatprep.subr.mxu0 0.0
      %1778 = vmatpush1.msra.mxu0 0.0
      %1779 = vmatprep.subr.mxu0 0.0
      %1780 = vmatpush1.msra.mxu0 0.0
      %1781 = vmatprep.subr.mxu0 0.0
      %1782 = vmatpush1.msra.mxu0 0.0
      %1783 = vmatprep.subr.mxu0 0.0
      %1784 = vmatpush1.msra.mxu0 0.0
      %1785 = vmatprep.subr.mxu0 0.0
      %1786 = vmatpush1.msra.mxu0 0.0
      %1787 = vmatprep.subr.mxu0 0.0
      %1788 = vmatpush1.msra.mxu0 0.0
      %1789 = vmatprep.subr.mxu0 0.0
      %1790 = vmatpush1.msra.mxu0 0.0
      %1791 = vmatprep.subr.mxu0 0.0
      %1792 = vmatpush1.msra.mxu0 0.0
      %1793 = vmatprep.mubr.f32.mxu0 0.0
      %1794 = vmatmul.mubr.f32.gmra.mrb[0].mxu0 %v435
      %v1795 = vpop.f32.mrb[0].mxu0
      %v1796 = vadd.f32 0.0, %v1795
      %v1797 = vpop.f32.mrb[0].mxu0
      %1798 = vmatprep.mubr.f32.mxu0 0.0
      %1799 = vmatmul.mubr.f32.gmra.mrb[0].mxu0 %v437
      %v1800 = vpop.f32.mrb[0].mxu0
      %v1801 = vadd.f32 0.0, %v1800
      %v1802 = vpop.f32.mrb[0].mxu0
      %1803 = vmatprep.mubr.f32.mxu0 0.0
      %1804 = vmatmul.mubr.f32.gmra.mrb[0].mxu0 %v439
      %v1805 = vpop.f32.mrb[0].mxu0
      %v1806 = vpop.f32.mrb[0].mxu0
      %1807 = vmatprep.mubr.f32.mxu0 0.0
      %1808 = vmatmul.mubr.f32.gmra.mrb[0].mxu0 %v441
      %v1809 = vpop.f32.mrb[0].mxu0
      %v1810 = vadd.f32 0.0, %v1809
      %v1811 = vpop.f32.mrb[0].mxu0
      %1812 = vmatprep.mubr.f32.mxu0 0.0
      %1813 = vmatmul.mubr.f32.gmra.mrb[0].mxu0 %v443
      %v1814 = vpop.f32.mrb[0].mxu0
      %v1815 = vadd.f32 0.0, %v1814
      %v1816 = vpop.f32.mrb[0].mxu0
      %1817 = vmatprep.mubr.f32.mxu0 0.0
      %1818 = vmatmul.mubr.f32.gmra.mrb[0].mxu0 %v445
      %v1819 = vpop.f32.mrb[0].mxu0
      %v1820 = vpop.f32.mrb[0].mxu0
      %1821 = vmatprep.mubr.f32.mxu0 0.0
      %1822 = vmatmul.mubr.f32.gmra.mrb[0].mxu0 %v571
      %v1823 = vpop.f32.mrb[0].mxu0
      %v1824 = vadd.f32 0.0, %v1823
      %v1825 = vpop.f32.mrb[0].mxu0
      %1826 = vmatprep.mubr.f32.mxu0 0.0
      %1827 = vmatmul.mubr.f32.gmra.mrb[0].mxu0 %v574
      %v1828 = vpop.f32.mrb[0].mxu0
      %v1829 = vadd.f32 0.0, %v1828
      %v1830 = vpop.f32.mrb[0].mxu0
      %1831 = vmatprep.mubr.f32.mxu0 0.0
      %1832 = vmatmul.mubr.f32.gmra.mrb[0].mxu0 %v577
      %v1833 = vpop.f32.mrb[0].mxu0
      %v1834 = vpop.f32.mrb[0].mxu0
      %1835 = vmatprep.mubr.f32.mxu0 0.0
      %1836 = vmatmul.mubr.f32.gmra.mrb[0].mxu0 %v1718
      %v1837 = vpop.f32.mrb[0].mxu0
      %v1838 = vadd.f32 0.0, %v1837
      %v1839 = vpop.f32.mrb[0].mxu0
      %1840 = vmatprep.mubr.f32.mxu0 0.0
      %1841 = vmatmul.mubr.f32.gmra.mrb[0].mxu0 %v1721
      %v1842 = vpop.f32.mrb[0].mxu0
      %v1843 = vadd.f32 0.0, %v1842
      %v1844 = vpop.f32.mrb[0].mxu0
      %1845 = vmatprep.mubr.f32.mxu0 0.0
      %1846 = vmatmul.mubr.f32.gmra.mrb[0].mxu0 %v1724
      %v1847 = vpop.f32.mrb[0].mxu0
      %v1848 = vpop.f32.mrb[0].mxu0
      %1849 = vdwg.mxu0
      %v1850 = vadd.f32 %v1664, %v1796
      %v1851 = vadd.f32 %v1669, %v1801
      %v1852 = vadd.f32 %v1678, %v1810
      %v1853 = vadd.f32 %v1683, %v1815
      %v1854 = vadd.f32 %v1692, %v1824
      %v1855 = vadd.f32 %v1697, %v1829
      %v1856 = vadd.f32 %v1706, %v1838
      %v1857 = vadd.f32 %v1711, %v1843
      %v1859 = vrot.slane %v215, 1
      %v1860 = vsel %vm247, %v716, %v1859
      %v1861 = vrot.slane %v216, 1
      %v1862 = vsel %vm247, %v1859, %v1861
      %v1863 = vrot.slane 0.0, 1
      %v1864 = vsel %vm247, %v1861, %v1863
      %v1865 = vsel %vm273, %v1860, 0
      %v1867 = vsel %vm273, %v1862, 0
      %v1869 = vsel %vm273, %v1864, 0
      %v1872 = vsel %vm298, %v228, 0
      %1874 = vmatprep.subr.mxu0 0.0
      %1875 = vmatpush1.msra.mxu0 %v1872
      %1876 = vmatprep.subr.mxu0 0.0
      %1877 = vmatpush1.msra.mxu0 0.0
      %1878 = vmatprep.subr.mxu0 0.0
      %1879 = vmatpush1.msra.mxu0 0.0
      %1880 = vmatprep.subr.mxu0 0.0
      %1881 = vmatpush1.msra.mxu0 0.0
      %1882 = vmatprep.subr.mxu0 0.0
      %1883 = vmatpush1.msra.mxu0 0.0
      %1884 = vmatprep.subr.mxu0 0.0
      %1885 = vmatpush1.msra.mxu0 0.0
      %1886 = vmatprep.subr.mxu0 0.0
      %1887 = vmatpush1.msra.mxu0 0.0
      %1888 = vmatprep.subr.mxu0 0.0
      %1889 = vmatpush1.msra.mxu0 0.0
      %1890 = vmatprep.subr.mxu0 0.0
      %1891 = vmatpush1.msra.mxu0 0.0
      %1892 = vmatprep.subr.mxu0 0.0
      %1893 = vmatpush1.msra.mxu0 0.0
      %1894 = vmatprep.subr.mxu0 0.0
      %1895 = vmatpush1.msra.mxu0 0.0
      %1896 = vmatprep.subr.mxu0 0.0
      %1897 = vmatpush1.msra.mxu0 0.0
      %1898 = vmatprep.subr.mxu0 0.0
      %1899 = vmatpush1.msra.mxu0 0.0
      %1900 = vmatprep.subr.mxu0 0.0
      %1901 = vmatpush1.msra.mxu0 0.0
      %1902 = vmatprep.subr.mxu0 0.0
      %1903 = vmatpush1.msra.mxu0 0.0
      %1904 = vmatprep.subr.mxu0 0.0
      %1905 = vmatpush1.msra.mxu0 0.0
      %1906 = vmatprep.subr.mxu0 0.0
      %1907 = vmatpush1.msra.mxu0 0.0
      %1908 = vmatprep.subr.mxu0 0.0
      %1909 = vmatpush1.msra.mxu0 0.0
      %1910 = vmatprep.subr.mxu0 0.0
      %1911 = vmatpush1.msra.mxu0 0.0
      %1912 = vmatprep.subr.mxu0 0.0
      %1913 = vmatpush1.msra.mxu0 0.0
      %1914 = vmatprep.subr.mxu0 0.0
      %1915 = vmatpush1.msra.mxu0 0.0
      %1916 = vmatprep.subr.mxu0 0.0
      %1917 = vmatpush1.msra.mxu0 0.0
      %1918 = vmatprep.subr.mxu0 0.0
      %1919 = vmatpush1.msra.mxu0 0.0
      %1920 = vmatprep.subr.mxu0 0.0
      %1921 = vmatpush1.msra.mxu0 0.0
      %1922 = vmatprep.subr.mxu0 0.0
      %1923 = vmatpush1.msra.mxu0 0.0
      %1924 = vmatprep.subr.mxu0 0.0
      %1925 = vmatpush1.msra.mxu0 0.0
      %1926 = vmatprep.subr.mxu0 0.0
      %1927 = vmatpush1.msra.mxu0 0.0
      %1928 = vmatprep.subr.mxu0 0.0
      %1929 = vmatpush1.msra.mxu0 0.0
      %1930 = vmatprep.subr.mxu0 0.0
      %1931 = vmatpush1.msra.mxu0 0.0
      %1932 = vmatprep.subr.mxu0 0.0
      %1933 = vmatpush1.msra.mxu0 0.0
      %1934 = vmatprep.subr.mxu0 0.0
      %1935 = vmatpush1.msra.mxu0 0.0
      %1936 = vmatprep.subr.mxu0 0.0
      %1937 = vmatpush1.msra.mxu0 0.0
      %1938 = vmatprep.mubr.f32.mxu0 0.0
      %1939 = vmatmul.mubr.f32.gmra.mrb[0].mxu0 %v286
      %v1940 = vpop.f32.mrb[0].mxu0
      %v1941 = vadd.f32 0.0, %v1940
      %v1942 = vpop.f32.mrb[0].mxu0
      %1943 = vmatprep.mubr.f32.mxu0 0.0
      %1944 = vmatmul.mubr.f32.gmra.mrb[0].mxu0 %v288
      %v1945 = vpop.f32.mrb[0].mxu0
      %v1946 = vadd.f32 0.0, %v1945
      %v1947 = vpop.f32.mrb[0].mxu0
      %1948 = vmatprep.mubr.f32.mxu0 0.0
      %1949 = vmatmul.mubr.f32.gmra.mrb[0].mxu0 %v290
      %v1950 = vpop.f32.mrb[0].mxu0
      %v1951 = vpop.f32.mrb[0].mxu0
      %1952 = vmatprep.mubr.f32.mxu0 0.0
      %1953 = vmatmul.mubr.f32.gmra.mrb[0].mxu0 %v292
      %v1954 = vpop.f32.mrb[0].mxu0
      %v1955 = vadd.f32 0.0, %v1954
      %v1956 = vpop.f32.mrb[0].mxu0
      %1957 = vmatprep.mubr.f32.mxu0 0.0
      %1958 = vmatmul.mubr.f32.gmra.mrb[0].mxu0 %v294
      %v1959 = vpop.f32.mrb[0].mxu0
      %v1960 = vadd.f32 0.0, %v1959
      %v1961 = vpop.f32.mrb[0].mxu0
      %1962 = vmatprep.mubr.f32.mxu0 0.0
      %1963 = vmatmul.mubr.f32.gmra.mrb[0].mxu0 %v296
      %v1964 = vpop.f32.mrb[0].mxu0
      %v1965 = vpop.f32.mrb[0].mxu0
      %1966 = vmatprep.mubr.f32.mxu0 0.0
      %1967 = vmatmul.mubr.f32.gmra.mrb[0].mxu0 %v718
      %v1968 = vpop.f32.mrb[0].mxu0
      %v1969 = vadd.f32 0.0, %v1968
      %v1970 = vpop.f32.mrb[0].mxu0
      %1971 = vmatprep.mubr.f32.mxu0 0.0
      %1972 = vmatmul.mubr.f32.gmra.mrb[0].mxu0 %v720
      %v1973 = vpop.f32.mrb[0].mxu0
      %v1974 = vadd.f32 0.0, %v1973
      %v1975 = vpop.f32.mrb[0].mxu0
      %1976 = vmatprep.mubr.f32.mxu0 0.0
      %1977 = vmatmul.mubr.f32.gmra.mrb[0].mxu0 %v722
      %v1978 = vpop.f32.mrb[0].mxu0
      %v1979 = vpop.f32.mrb[0].mxu0
      %1980 = vmatprep.mubr.f32.mxu0 0.0
      %1981 = vmatmul.mubr.f32.gmra.mrb[0].mxu0 %v1865
      %v1982 = vpop.f32.mrb[0].mxu0
      %v1983 = vadd.f32 0.0, %v1982
      %v1984 = vpop.f32.mrb[0].mxu0
      %1985 = vmatprep.mubr.f32.mxu0 0.0
      %1986 = vmatmul.mubr.f32.gmra.mrb[0].mxu0 %v1867
      %v1987 = vpop.f32.mrb[0].mxu0
      %v1988 = vadd.f32 0.0, %v1987
      %v1989 = vpop.f32.mrb[0].mxu0
      %1990 = vmatprep.mubr.f32.mxu0 0.0
      %1991 = vmatmul.mubr.f32.gmra.mrb[0].mxu0 %v1869
      %v1992 = vpop.f32.mrb[0].mxu0
      %v1993 = vpop.f32.mrb[0].mxu0
      %1994 = vdwg.mxu0
      %v1995 = vadd.f32 %v1850, %v1941
      %v1996 = vadd.f32 %v1851, %v1946
      %v1997 = vadd.f32 %v1852, %v1955
      %v1998 = vadd.f32 %v1853, %v1960
      %v1999 = vadd.f32 %v1854, %v1969
      %v2000 = vadd.f32 %v1855, %v1974
      %v2001 = vadd.f32 %v1856, %v1983
      %v2002 = vadd.f32 %v1857, %v1988
      %v2003 = vadd.f32 %v1995, %v860
      %v2004 = vadd.f32 %v1996, %v860
      %v2005 = vadd.f32 %v1997, %v860
      %v2006 = vadd.f32 %v1998, %v860
      %v2007 = vadd.f32 %v1999, %v860
      %v2008 = vadd.f32 %v2000, %v860
      %v2009 = vadd.f32 %v2001, %v860
      %v2010 = vadd.f32 %v2002, %v860
      %s2011 = scalar_lea.vmem %s194, 32
      %2012 = vst.msk [vmem:[%s2011] sm:$0xff] %vm870, %v2003
      %2013 = vst.msk [vmem:[%s2011 + $0x8] sm:$0xff] %vm870, %v2004
      %2014 = vst.msk [vmem:[%s2011 + $0x40] sm:$0xff] %vm870, %v2005
      %2015 = vst.msk [vmem:[%s2011 + $0x48] sm:$0xff] %vm870, %v2006
      %2016 = vst.msk [vmem:[%s2011 + $0x80] sm:$0xff] %vm870, %v2007
      %2017 = vst.msk [vmem:[%s2011 + $0x88] sm:$0xff] %vm870, %v2008
      %2018 = vst.msk [vmem:[%s2011 + $0xc0] sm:$0xff] %vm870, %v2009
      %2019 = vst.msk [vmem:[%s2011 + $0xc8] sm:$0xff] %vm870, %v2010
      %v2021 = vsel %vm298, %v230, 0
      %2023 = vmatprep.subr.mxu0 0.0
      %2024 = vmatpush1.msra.mxu0 %v2021
      %2025 = vmatprep.subr.mxu0 0.0
      %2026 = vmatpush1.msra.mxu0 0.0
      %2027 = vmatprep.subr.mxu0 0.0
      %2028 = vmatpush1.msra.mxu0 0.0
      %2029 = vmatprep.subr.mxu0 0.0
      %2030 = vmatpush1.msra.mxu0 0.0
      %2031 = vmatprep.subr.mxu0 0.0
      %2032 = vmatpush1.msra.mxu0 0.0
      %2033 = vmatprep.subr.mxu0 0.0
      %2034 = vmatpush1.msra.mxu0 0.0
      %2035 = vmatprep.subr.mxu0 0.0
      %2036 = vmatpush1.msra.mxu0 0.0
      %2037 = vmatprep.subr.mxu0 0.0
      %2038 = vmatpush1.msra.mxu0 0.0
      %2039 = vmatprep.subr.mxu0 0.0
      %2040 = vmatpush1.msra.mxu0 0.0
      %2041 = vmatprep.subr.mxu0 0.0
      %2042 = vmatpush1.msra.mxu0 0.0
      %2043 = vmatprep.subr.mxu0 0.0
      %2044 = vmatpush1.msra.mxu0 0.0
      %2045 = vmatprep.subr.mxu0 0.0
      %2046 = vmatpush1.msra.mxu0 0.0
      %2047 = vmatprep.subr.mxu0 0.0
      %2048 = vmatpush1.msra.mxu0 0.0
      %2049 = vmatprep.subr.mxu0 0.0
      %2050 = vmatpush1.msra.mxu0 0.0
      %2051 = vmatprep.subr.mxu0 0.0
      %2052 = vmatpush1.msra.mxu0 0.0
      %2053 = vmatprep.subr.mxu0 0.0
      %2054 = vmatpush1.msra.mxu0 0.0
      %2055 = vmatprep.subr.mxu0 0.0
      %2056 = vmatpush1.msra.mxu0 0.0
      %2057 = vmatprep.subr.mxu0 0.0
      %2058 = vmatpush1.msra.mxu0 0.0
      %2059 = vmatprep.subr.mxu0 0.0
      %2060 = vmatpush1.msra.mxu0 0.0
      %2061 = vmatprep.subr.mxu0 0.0
      %2062 = vmatpush1.msra.mxu0 0.0
      %2063 = vmatprep.subr.mxu0 0.0
      %2064 = vmatpush1.msra.mxu0 0.0
      %2065 = vmatprep.subr.mxu0 0.0
      %2066 = vmatpush1.msra.mxu0 0.0
      %2067 = vmatprep.subr.mxu0 0.0
      %2068 = vmatpush1.msra.mxu0 0.0
      %2069 = vmatprep.subr.mxu0 0.0
      %2070 = vmatpush1.msra.mxu0 0.0
      %2071 = vmatprep.subr.mxu0 0.0
      %2072 = vmatpush1.msra.mxu0 0.0
      %2073 = vmatprep.subr.mxu0 0.0
      %2074 = vmatpush1.msra.mxu0 0.0
      %2075 = vmatprep.subr.mxu0 0.0
      %2076 = vmatpush1.msra.mxu0 0.0
      %2077 = vmatprep.subr.mxu0 0.0
      %2078 = vmatpush1.msra.mxu0 0.0
      %2079 = vmatprep.subr.mxu0 0.0
      %2080 = vmatpush1.msra.mxu0 0.0
      %2081 = vmatprep.subr.mxu0 0.0
      %2082 = vmatpush1.msra.mxu0 0.0
      %2083 = vmatprep.subr.mxu0 0.0
      %2084 = vmatpush1.msra.mxu0 0.0
      %2085 = vmatprep.subr.mxu0 0.0
      %2086 = vmatpush1.msra.mxu0 0.0
      %2087 = vmatprep.mubr.f32.mxu0 0.0
      %2088 = vmatmul.mubr.f32.gmra.mrb[0].mxu0 %v911
      %v2089 = vpop.f32.mrb[0].mxu0
      %v2090 = vadd.f32 0.0, %v2089
      %v2091 = vpop.f32.mrb[0].mxu0
      %2092 = vmatprep.mubr.f32.mxu0 0.0
      %2093 = vmatmul.mubr.f32.gmra.mrb[0].mxu0 %v913
      %v2094 = vpop.f32.mrb[0].mxu0
      %v2095 = vadd.f32 0.0, %v2094
      %v2096 = vpop.f32.mrb[0].mxu0
      %2097 = vmatprep.mubr.f32.mxu0 0.0
      %2098 = vmatmul.mubr.f32.gmra.mrb[0].mxu0 %v915
      %v2099 = vpop.f32.mrb[0].mxu0
      %v2100 = vpop.f32.mrb[0].mxu0
      %2101 = vmatprep.mubr.f32.mxu0 0.0
      %2102 = vmatmul.mubr.f32.gmra.mrb[0].mxu0 %v917
      %v2103 = vpop.f32.mrb[0].mxu0
      %v2104 = vadd.f32 0.0, %v2103
      %v2105 = vpop.f32.mrb[0].mxu0
      %2106 = vmatprep.mubr.f32.mxu0 0.0
      %2107 = vmatmul.mubr.f32.gmra.mrb[0].mxu0 %v919
      %v2108 = vpop.f32.mrb[0].mxu0
      %v2109 = vadd.f32 0.0, %v2108
      %v2110 = vpop.f32.mrb[0].mxu0
      %2111 = vmatprep.mubr.f32.mxu0 0.0
      %2112 = vmatmul.mubr.f32.gmra.mrb[0].mxu0 %v921
      %v2113 = vpop.f32.mrb[0].mxu0
      %v2114 = vpop.f32.mrb[0].mxu0
      %2115 = vmatprep.mubr.f32.mxu0 0.0
      %2116 = vmatmul.mubr.f32.gmra.mrb[0].mxu0 %v923
      %v2117 = vpop.f32.mrb[0].mxu0
      %v2118 = vadd.f32 0.0, %v2117
      %v2119 = vpop.f32.mrb[0].mxu0
      %2120 = vmatprep.mubr.f32.mxu0 0.0
      %2121 = vmatmul.mubr.f32.gmra.mrb[0].mxu0 %v925
      %v2122 = vpop.f32.mrb[0].mxu0
      %v2123 = vadd.f32 0.0, %v2122
      %v2124 = vpop.f32.mrb[0].mxu0
      %2125 = vmatprep.mubr.f32.mxu0 0.0
      %2126 = vmatmul.mubr.f32.gmra.mrb[0].mxu0 %v927
      %v2127 = vpop.f32.mrb[0].mxu0
      %v2128 = vpop.f32.mrb[0].mxu0
      %2129 = vmatprep.mubr.f32.mxu0 0.0
      %2130 = vmatmul.mubr.f32.gmra.mrb[0].mxu0 %v1315
      %v2131 = vpop.f32.mrb[0].mxu0
      %v2132 = vadd.f32 0.0, %v2131
      %v2133 = vpop.f32.mrb[0].mxu0
      %2134 = vmatprep.mubr.f32.mxu0 0.0
      %2135 = vmatmul.mubr.f32.gmra.mrb[0].mxu0 %v1317
      %v2136 = vpop.f32.mrb[0].mxu0
      %v2137 = vadd.f32 0.0, %v2136
      %v2138 = vpop.f32.mrb[0].mxu0
      %2139 = vmatprep.mubr.f32.mxu0 0.0
      %2140 = vmatmul.mubr.f32.gmra.mrb[0].mxu0 %v1319
      %v2141 = vpop.f32.mrb[0].mxu0
      %v2142 = vpop.f32.mrb[0].mxu0
      %2143 = vdwg.mxu0
      %v2145 = vsel %vm298, %v229, 0
      %2147 = vmatprep.subr.mxu0 0.0
      %2148 = vmatpush1.msra.mxu0 %v2145
      %2149 = vmatprep.subr.mxu0 0.0
      %2150 = vmatpush1.msra.mxu0 0.0
      %2151 = vmatprep.subr.mxu0 0.0
      %2152 = vmatpush1.msra.mxu0 0.0
      %2153 = vmatprep.subr.mxu0 0.0
      %2154 = vmatpush1.msra.mxu0 0.0
      %2155 = vmatprep.subr.mxu0 0.0
      %2156 = vmatpush1.msra.mxu0 0.0
      %2157 = vmatprep.subr.mxu0 0.0
      %2158 = vmatpush1.msra.mxu0 0.0
      %2159 = vmatprep.subr.mxu0 0.0
      %2160 = vmatpush1.msra.mxu0 0.0
      %2161 = vmatprep.subr.mxu0 0.0
      %2162 = vmatpush1.msra.mxu0 0.0
      %2163 = vmatprep.subr.mxu0 0.0
      %2164 = vmatpush1.msra.mxu0 0.0
      %2165 = vmatprep.subr.mxu0 0.0
      %2166 = vmatpush1.msra.mxu0 0.0
      %2167 = vmatprep.subr.mxu0 0.0
      %2168 = vmatpush1.msra.mxu0 0.0
      %2169 = vmatprep.subr.mxu0 0.0
      %2170 = vmatpush1.msra.mxu0 0.0
      %2171 = vmatprep.subr.mxu0 0.0
      %2172 = vmatpush1.msra.mxu0 0.0
      %2173 = vmatprep.subr.mxu0 0.0
      %2174 = vmatpush1.msra.mxu0 0.0
      %2175 = vmatprep.subr.mxu0 0.0
      %2176 = vmatpush1.msra.mxu0 0.0
      %2177 = vmatprep.subr.mxu0 0.0
      %2178 = vmatpush1.msra.mxu0 0.0
      %2179 = vmatprep.subr.mxu0 0.0
      %2180 = vmatpush1.msra.mxu0 0.0
      %2181 = vmatprep.subr.mxu0 0.0
      %2182 = vmatpush1.msra.mxu0 0.0
      %2183 = vmatprep.subr.mxu0 0.0
      %2184 = vmatpush1.msra.mxu0 0.0
      %2185 = vmatprep.subr.mxu0 0.0
      %2186 = vmatpush1.msra.mxu0 0.0
      %2187 = vmatprep.subr.mxu0 0.0
      %2188 = vmatpush1.msra.mxu0 0.0
      %2189 = vmatprep.subr.mxu0 0.0
      %2190 = vmatpush1.msra.mxu0 0.0
      %2191 = vmatprep.subr.mxu0 0.0
      %2192 = vmatpush1.msra.mxu0 0.0
      %2193 = vmatprep.subr.mxu0 0.0
      %2194 = vmatpush1.msra.mxu0 0.0
      %2195 = vmatprep.subr.mxu0 0.0
      %2196 = vmatpush1.msra.mxu0 0.0
      %2197 = vmatprep.subr.mxu0 0.0
      %2198 = vmatpush1.msra.mxu0 0.0
      %2199 = vmatprep.subr.mxu0 0.0
      %2200 = vmatpush1.msra.mxu0 0.0
      %2201 = vmatprep.subr.mxu0 0.0
      %2202 = vmatpush1.msra.mxu0 0.0
      %2203 = vmatprep.subr.mxu0 0.0
      %2204 = vmatpush1.msra.mxu0 0.0
      %2205 = vmatprep.subr.mxu0 0.0
      %2206 = vmatpush1.msra.mxu0 0.0
      %2207 = vmatprep.subr.mxu0 0.0
      %2208 = vmatpush1.msra.mxu0 0.0
      %2209 = vmatprep.subr.mxu0 0.0
      %2210 = vmatpush1.msra.mxu0 0.0
      %2211 = vmatprep.mubr.f32.mxu0 0.0
      %2212 = vmatmul.mubr.f32.gmra.mrb[0].mxu0 %v280
      %v2213 = vpop.f32.mrb[0].mxu0
      %v2214 = vadd.f32 %v2090, %v2213
      %v2215 = vpop.f32.mrb[0].mxu0
      %2216 = vmatprep.mubr.f32.mxu0 0.0
      %2217 = vmatmul.mubr.f32.gmra.mrb[0].mxu0 %v282
      %v2218 = vpop.f32.mrb[0].mxu0
      %v2219 = vadd.f32 %v2095, %v2218
      %v2220 = vpop.f32.mrb[0].mxu0
      %2221 = vmatprep.mubr.f32.mxu0 0.0
      %2222 = vmatmul.mubr.f32.gmra.mrb[0].mxu0 %v284
      %v2223 = vpop.f32.mrb[0].mxu0
      %v2224 = vpop.f32.mrb[0].mxu0
      %2225 = vmatprep.mubr.f32.mxu0 0.0
      %2226 = vmatmul.mubr.f32.gmra.mrb[0].mxu0 %v286
      %v2227 = vpop.f32.mrb[0].mxu0
      %v2228 = vadd.f32 %v2104, %v2227
      %v2229 = vpop.f32.mrb[0].mxu0
      %2230 = vmatprep.mubr.f32.mxu0 0.0
      %2231 = vmatmul.mubr.f32.gmra.mrb[0].mxu0 %v288
      %v2232 = vpop.f32.mrb[0].mxu0
      %v2233 = vadd.f32 %v2109, %v2232
      %v2234 = vpop.f32.mrb[0].mxu0
      %2235 = vmatprep.mubr.f32.mxu0 0.0
      %2236 = vmatmul.mubr.f32.gmra.mrb[0].mxu0 %v290
      %v2237 = vpop.f32.mrb[0].mxu0
      %v2238 = vpop.f32.mrb[0].mxu0
      %2239 = vmatprep.mubr.f32.mxu0 0.0
      %2240 = vmatmul.mubr.f32.gmra.mrb[0].mxu0 %v292
      %v2241 = vpop.f32.mrb[0].mxu0
      %v2242 = vadd.f32 %v2118, %v2241
      %v2243 = vpop.f32.mrb[0].mxu0
      %2244 = vmatprep.mubr.f32.mxu0 0.0
      %2245 = vmatmul.mubr.f32.gmra.mrb[0].mxu0 %v294
      %v2246 = vpop.f32.mrb[0].mxu0
      %v2247 = vadd.f32 %v2123, %v2246
      %v2248 = vpop.f32.mrb[0].mxu0
      %2249 = vmatprep.mubr.f32.mxu0 0.0
      %2250 = vmatmul.mubr.f32.gmra.mrb[0].mxu0 %v296
      %v2251 = vpop.f32.mrb[0].mxu0
      %v2252 = vpop.f32.mrb[0].mxu0
      %2253 = vmatprep.mubr.f32.mxu0 0.0
      %2254 = vmatmul.mubr.f32.gmra.mrb[0].mxu0 %v718
      %v2255 = vpop.f32.mrb[0].mxu0
      %v2256 = vadd.f32 %v2132, %v2255
      %v2257 = vpop.f32.mrb[0].mxu0
      %2258 = vmatprep.mubr.f32.mxu0 0.0
      %2259 = vmatmul.mubr.f32.gmra.mrb[0].mxu0 %v720
      %v2260 = vpop.f32.mrb[0].mxu0
      %v2261 = vadd.f32 %v2137, %v2260
      %v2262 = vpop.f32.mrb[0].mxu0
      %2263 = vmatprep.mubr.f32.mxu0 0.0
      %2264 = vmatmul.mubr.f32.gmra.mrb[0].mxu0 %v722
      %v2265 = vpop.f32.mrb[0].mxu0
      %v2266 = vpop.f32.mrb[0].mxu0
      %2267 = vdwg.mxu0
      %v2269 = vsel %vm298, %v231, 0
      %2271 = vmatprep.subr.mxu0 0.0
      %2272 = vmatpush1.msra.mxu0 %v2269
      %2273 = vmatprep.subr.mxu0 0.0
      %2274 = vmatpush1.msra.mxu0 0.0
      %2275 = vmatprep.subr.mxu0 0.0
      %2276 = vmatpush1.msra.mxu0 0.0
      %2277 = vmatprep.subr.mxu0 0.0
      %2278 = vmatpush1.msra.mxu0 0.0
      %2279 = vmatprep.subr.mxu0 0.0
      %2280 = vmatpush1.msra.mxu0 0.0
      %2281 = vmatprep.subr.mxu0 0.0
      %2282 = vmatpush1.msra.mxu0 0.0
      %2283 = vmatprep.subr.mxu0 0.0
      %2284 = vmatpush1.msra.mxu0 0.0
      %2285 = vmatprep.subr.mxu0 0.0
      %2286 = vmatpush1.msra.mxu0 0.0
      %2287 = vmatprep.subr.mxu0 0.0
      %2288 = vmatpush1.msra.mxu0 0.0
      %2289 = vmatprep.subr.mxu0 0.0
      %2290 = vmatpush1.msra.mxu0 0.0
      %2291 = vmatprep.subr.mxu0 0.0
      %2292 = vmatpush1.msra.mxu0 0.0
      %2293 = vmatprep.subr.mxu0 0.0
      %2294 = vmatpush1.msra.mxu0 0.0
      %2295 = vmatprep.subr.mxu0 0.0
      %2296 = vmatpush1.msra.mxu0 0.0
      %2297 = vmatprep.subr.mxu0 0.0
      %2298 = vmatpush1.msra.mxu0 0.0
      %2299 = vmatprep.subr.mxu0 0.0
      %2300 = vmatpush1.msra.mxu0 0.0
      %2301 = vmatprep.subr.mxu0 0.0
      %2302 = vmatpush1.msra.mxu0 0.0
      %2303 = vmatprep.subr.mxu0 0.0
      %2304 = vmatpush1.msra.mxu0 0.0
      %2305 = vmatprep.subr.mxu0 0.0
      %2306 = vmatpush1.msra.mxu0 0.0
      %2307 = vmatprep.subr.mxu0 0.0
      %2308 = vmatpush1.msra.mxu0 0.0
      %2309 = vmatprep.subr.mxu0 0.0
      %2310 = vmatpush1.msra.mxu0 0.0
      %2311 = vmatprep.subr.mxu0 0.0
      %2312 = vmatpush1.msra.mxu0 0.0
      %2313 = vmatprep.subr.mxu0 0.0
      %2314 = vmatpush1.msra.mxu0 0.0
      %2315 = vmatprep.subr.mxu0 0.0
      %2316 = vmatpush1.msra.mxu0 0.0
      %2317 = vmatprep.subr.mxu0 0.0
      %2318 = vmatpush1.msra.mxu0 0.0
      %2319 = vmatprep.subr.mxu0 0.0
      %2320 = vmatpush1.msra.mxu0 0.0
      %2321 = vmatprep.subr.mxu0 0.0
      %2322 = vmatpush1.msra.mxu0 0.0
      %2323 = vmatprep.subr.mxu0 0.0
      %2324 = vmatpush1.msra.mxu0 0.0
      %2325 = vmatprep.subr.mxu0 0.0
      %2326 = vmatpush1.msra.mxu0 0.0
      %2327 = vmatprep.subr.mxu0 0.0
      %2328 = vmatpush1.msra.mxu0 0.0
      %2329 = vmatprep.subr.mxu0 0.0
      %2330 = vmatpush1.msra.mxu0 0.0
      %2331 = vmatprep.subr.mxu0 0.0
      %2332 = vmatpush1.msra.mxu0 0.0
      %2333 = vmatprep.subr.mxu0 0.0
      %2334 = vmatpush1.msra.mxu0 0.0
      %2335 = vmatprep.mubr.f32.mxu0 0.0
      %2336 = vmatmul.mubr.f32.gmra.mrb[0].mxu0 %v286
      %v2337 = vpop.f32.mrb[0].mxu0
      %v2338 = vadd.f32 0.0, %v2337
      %v2339 = vpop.f32.mrb[0].mxu0
      %2340 = vmatprep.mubr.f32.mxu0 0.0
      %2341 = vmatmul.mubr.f32.gmra.mrb[0].mxu0 %v288
      %v2342 = vpop.f32.mrb[0].mxu0
      %v2343 = vadd.f32 0.0, %v2342
      %v2344 = vpop.f32.mrb[0].mxu0
      %2345 = vmatprep.mubr.f32.mxu0 0.0
      %2346 = vmatmul.mubr.f32.gmra.mrb[0].mxu0 %v290
      %v2347 = vpop.f32.mrb[0].mxu0
      %v2348 = vpop.f32.mrb[0].mxu0
      %2349 = vmatprep.mubr.f32.mxu0 0.0
      %2350 = vmatmul.mubr.f32.gmra.mrb[0].mxu0 %v292
      %v2351 = vpop.f32.mrb[0].mxu0
      %v2352 = vadd.f32 0.0, %v2351
      %v2353 = vpop.f32.mrb[0].mxu0
      %2354 = vmatprep.mubr.f32.mxu0 0.0
      %2355 = vmatmul.mubr.f32.gmra.mrb[0].mxu0 %v294
      %v2356 = vpop.f32.mrb[0].mxu0
      %v2357 = vadd.f32 0.0, %v2356
      %v2358 = vpop.f32.mrb[0].mxu0
      %2359 = vmatprep.mubr.f32.mxu0 0.0
      %2360 = vmatmul.mubr.f32.gmra.mrb[0].mxu0 %v296
      %v2361 = vpop.f32.mrb[0].mxu0
      %v2362 = vpop.f32.mrb[0].mxu0
      %2363 = vmatprep.mubr.f32.mxu0 0.0
      %2364 = vmatmul.mubr.f32.gmra.mrb[0].mxu0 %v718
      %v2365 = vpop.f32.mrb[0].mxu0
      %v2366 = vadd.f32 0.0, %v2365
      %v2367 = vpop.f32.mrb[0].mxu0
      %2368 = vmatprep.mubr.f32.mxu0 0.0
      %2369 = vmatmul.mubr.f32.gmra.mrb[0].mxu0 %v720
      %v2370 = vpop.f32.mrb[0].mxu0
      %v2371 = vadd.f32 0.0, %v2370
      %v2372 = vpop.f32.mrb[0].mxu0
      %2373 = vmatprep.mubr.f32.mxu0 0.0
      %2374 = vmatmul.mubr.f32.gmra.mrb[0].mxu0 %v722
      %v2375 = vpop.f32.mrb[0].mxu0
      %v2376 = vpop.f32.mrb[0].mxu0
      %2377 = vmatprep.mubr.f32.mxu0 0.0
      %2378 = vmatmul.mubr.f32.gmra.mrb[0].mxu0 %v1865
      %v2379 = vpop.f32.mrb[0].mxu0
      %v2380 = vadd.f32 0.0, %v2379
      %v2381 = vpop.f32.mrb[0].mxu0
      %2382 = vmatprep.mubr.f32.mxu0 0.0
      %2383 = vmatmul.mubr.f32.gmra.mrb[0].mxu0 %v1867
      %v2384 = vpop.f32.mrb[0].mxu0
      %v2385 = vadd.f32 0.0, %v2384
      %v2386 = vpop.f32.mrb[0].mxu0
      %2387 = vmatprep.mubr.f32.mxu0 0.0
      %2388 = vmatmul.mubr.f32.gmra.mrb[0].mxu0 %v1869
      %v2389 = vpop.f32.mrb[0].mxu0
      %v2390 = vpop.f32.mrb[0].mxu0
      %2391 = vdwg.mxu0
      %v2392 = vadd.f32 %v2214, %v2338
      %v2393 = vadd.f32 %v2219, %v2343
      %v2394 = vadd.f32 %v2228, %v2352
      %v2395 = vadd.f32 %v2233, %v2357
      %v2396 = vadd.f32 %v2242, %v2366
      %v2397 = vadd.f32 %v2247, %v2371
      %v2398 = vadd.f32 %v2256, %v2380
      %v2399 = vadd.f32 %v2261, %v2385
      %v2400 = vrot.slane %v215, 2
      %v2401 = vsel %vm879, %v1313, %v2400
      %v2402 = vrot.slane %v216, 2
      %v2403 = vsel %vm879, %v2400, %v2402
      %v2404 = vrot.slane 0.0, 2
      %v2405 = vsel %vm879, %v2402, %v2404
      %v2406 = vsel %vm273, %v2401, 0
      %v2408 = vsel %vm273, %v2403, 0
      %v2410 = vsel %vm273, %v2405, 0
      %v2413 = vsel %vm298, %v232, 0
      %2415 = vmatprep.subr.mxu0 0.0
      %2416 = vmatpush1.msra.mxu0 %v2413
      %2417 = vmatprep.subr.mxu0 0.0
      %2418 = vmatpush1.msra.mxu0 0.0
      %2419 = vmatprep.subr.mxu0 0.0
      %2420 = vmatpush1.msra.mxu0 0.0
      %2421 = vmatprep.subr.mxu0 0.0
      %2422 = vmatpush1.msra.mxu0 0.0
      %2423 = vmatprep.subr.mxu0 0.0
      %2424 = vmatpush1.msra.mxu0 0.0
      %2425 = vmatprep.subr.mxu0 0.0
      %2426 = vmatpush1.msra.mxu0 0.0
      %2427 = vmatprep.subr.mxu0 0.0
      %2428 = vmatpush1.msra.mxu0 0.0
      %2429 = vmatprep.subr.mxu0 0.0
      %2430 = vmatpush1.msra.mxu0 0.0
      %2431 = vmatprep.subr.mxu0 0.0
      %2432 = vmatpush1.msra.mxu0 0.0
      %2433 = vmatprep.subr.mxu0 0.0
      %2434 = vmatpush1.msra.mxu0 0.0
      %2435 = vmatprep.subr.mxu0 0.0
      %2436 = vmatpush1.msra.mxu0 0.0
      %2437 = vmatprep.subr.mxu0 0.0
      %2438 = vmatpush1.msra.mxu0 0.0
      %2439 = vmatprep.subr.mxu0 0.0
      %2440 = vmatpush1.msra.mxu0 0.0
      %2441 = vmatprep.subr.mxu0 0.0
      %2442 = vmatpush1.msra.mxu0 0.0
      %2443 = vmatprep.subr.mxu0 0.0
      %2444 = vmatpush1.msra.mxu0 0.0
      %2445 = vmatprep.subr.mxu0 0.0
      %2446 = vmatpush1.msra.mxu0 0.0
      %2447 = vmatprep.subr.mxu0 0.0
      %2448 = vmatpush1.msra.mxu0 0.0
      %2449 = vmatprep.subr.mxu0 0.0
      %2450 = vmatpush1.msra.mxu0 0.0
      %2451 = vmatprep.subr.mxu0 0.0
      %2452 = vmatpush1.msra.mxu0 0.0
      %2453 = vmatprep.subr.mxu0 0.0
      %2454 = vmatpush1.msra.mxu0 0.0
      %2455 = vmatprep.subr.mxu0 0.0
      %2456 = vmatpush1.msra.mxu0 0.0
      %2457 = vmatprep.subr.mxu0 0.0
      %2458 = vmatpush1.msra.mxu0 0.0
      %2459 = vmatprep.subr.mxu0 0.0
      %2460 = vmatpush1.msra.mxu0 0.0
      %2461 = vmatprep.subr.mxu0 0.0
      %2462 = vmatpush1.msra.mxu0 0.0
      %2463 = vmatprep.subr.mxu0 0.0
      %2464 = vmatpush1.msra.mxu0 0.0
      %2465 = vmatprep.subr.mxu0 0.0
      %2466 = vmatpush1.msra.mxu0 0.0
      %2467 = vmatprep.subr.mxu0 0.0
      %2468 = vmatpush1.msra.mxu0 0.0
      %2469 = vmatprep.subr.mxu0 0.0
      %2470 = vmatpush1.msra.mxu0 0.0
      %2471 = vmatprep.subr.mxu0 0.0
      %2472 = vmatpush1.msra.mxu0 0.0
      %2473 = vmatprep.subr.mxu0 0.0
      %2474 = vmatpush1.msra.mxu0 0.0
      %2475 = vmatprep.subr.mxu0 0.0
      %2476 = vmatpush1.msra.mxu0 0.0
      %2477 = vmatprep.subr.mxu0 0.0
      %2478 = vmatpush1.msra.mxu0 0.0
      %2479 = vmatprep.mubr.f32.mxu0 0.0
      %2480 = vmatmul.mubr.f32.gmra.mrb[0].mxu0 %v917
      %v2481 = vpop.f32.mrb[0].mxu0
      %v2482 = vadd.f32 0.0, %v2481
      %v2483 = vpop.f32.mrb[0].mxu0
      %2484 = vmatprep.mubr.f32.mxu0 0.0
      %2485 = vmatmul.mubr.f32.gmra.mrb[0].mxu0 %v919
      %v2486 = vpop.f32.mrb[0].mxu0
      %v2487 = vadd.f32 0.0, %v2486
      %v2488 = vpop.f32.mrb[0].mxu0
      %2489 = vmatprep.mubr.f32.mxu0 0.0
      %2490 = vmatmul.mubr.f32.gmra.mrb[0].mxu0 %v921
      %v2491 = vpop.f32.mrb[0].mxu0
      %v2492 = vpop.f32.mrb[0].mxu0
      %2493 = vmatprep.mubr.f32.mxu0 0.0
      %2494 = vmatmul.mubr.f32.gmra.mrb[0].mxu0 %v923
      %v2495 = vpop.f32.mrb[0].mxu0
      %v2496 = vadd.f32 0.0, %v2495
      %v2497 = vpop.f32.mrb[0].mxu0
      %2498 = vmatprep.mubr.f32.mxu0 0.0
      %2499 = vmatmul.mubr.f32.gmra.mrb[0].mxu0 %v925
      %v2500 = vpop.f32.mrb[0].mxu0
      %v2501 = vadd.f32 0.0, %v2500
      %v2502 = vpop.f32.mrb[0].mxu0
      %2503 = vmatprep.mubr.f32.mxu0 0.0
      %2504 = vmatmul.mubr.f32.gmra.mrb[0].mxu0 %v927
      %v2505 = vpop.f32.mrb[0].mxu0
      %v2506 = vpop.f32.mrb[0].mxu0
      %2507 = vmatprep.mubr.f32.mxu0 0.0
      %2508 = vmatmul.mubr.f32.gmra.mrb[0].mxu0 %v1315
      %v2509 = vpop.f32.mrb[0].mxu0
      %v2510 = vadd.f32 0.0, %v2509
      %v2511 = vpop.f32.mrb[0].mxu0
      %2512 = vmatprep.mubr.f32.mxu0 0.0
      %2513 = vmatmul.mubr.f32.gmra.mrb[0].mxu0 %v1317
      %v2514 = vpop.f32.mrb[0].mxu0
      %v2515 = vadd.f32 0.0, %v2514
      %v2516 = vpop.f32.mrb[0].mxu0
      %2517 = vmatprep.mubr.f32.mxu0 0.0
      %2518 = vmatmul.mubr.f32.gmra.mrb[0].mxu0 %v1319
      %v2519 = vpop.f32.mrb[0].mxu0
      %v2520 = vpop.f32.mrb[0].mxu0
      %2521 = vmatprep.mubr.f32.mxu0 0.0
      %2522 = vmatmul.mubr.f32.gmra.mrb[0].mxu0 %v2406
      %v2523 = vpop.f32.mrb[0].mxu0
      %v2524 = vadd.f32 0.0, %v2523
      %v2525 = vpop.f32.mrb[0].mxu0
      %2526 = vmatprep.mubr.f32.mxu0 0.0
      %2527 = vmatmul.mubr.f32.gmra.mrb[0].mxu0 %v2408
      %v2528 = vpop.f32.mrb[0].mxu0
      %v2529 = vadd.f32 0.0, %v2528
      %v2530 = vpop.f32.mrb[0].mxu0
      %2531 = vmatprep.mubr.f32.mxu0 0.0
      %2532 = vmatmul.mubr.f32.gmra.mrb[0].mxu0 %v2410
      %v2533 = vpop.f32.mrb[0].mxu0
      %v2534 = vpop.f32.mrb[0].mxu0
      %2535 = vdwg.mxu0
      %v2536 = vadd.f32 %v2392, %v2482
      %v2537 = vadd.f32 %v2393, %v2487
      %v2538 = vadd.f32 %v2394, %v2496
      %v2539 = vadd.f32 %v2395, %v2501
      %v2540 = vadd.f32 %v2396, %v2510
      %v2541 = vadd.f32 %v2397, %v2515
      %v2542 = vadd.f32 %v2398, %v2524
      %v2543 = vadd.f32 %v2399, %v2529
      %v2544 = vadd.f32 %v2536, %v860
      %v2545 = vadd.f32 %v2537, %v860
      %v2546 = vadd.f32 %v2538, %v860
      %v2547 = vadd.f32 %v2539, %v860
      %v2548 = vadd.f32 %v2540, %v860
      %v2549 = vadd.f32 %v2541, %v860
      %v2550 = vadd.f32 %v2542, %v860
      %v2551 = vadd.f32 %v2543, %v860
      %s2552 = scalar_lea.vmem %s194, 48
      %2553 = vst.msk [vmem:[%s2552] sm:$0xff] %vm870, %v2544
      %2554 = vst.msk [vmem:[%s2552 + $0x8] sm:$0xff] %vm870, %v2545
      %2555 = vst.msk [vmem:[%s2552 + $0x40] sm:$0xff] %vm870, %v2546
      %2556 = vst.msk [vmem:[%s2552 + $0x48] sm:$0xff] %vm870, %v2547
      %2557 = vst.msk [vmem:[%s2552 + $0x80] sm:$0xff] %vm870, %v2548
      %2558 = vst.msk [vmem:[%s2552 + $0x88] sm:$0xff] %vm870, %v2549
      %2559 = vst.msk [vmem:[%s2552 + $0xc0] sm:$0xff] %vm870, %v2550
      %2560 = vst.msk [vmem:[%s2552 + $0xc8] sm:$0xff] %vm870, %v2551
      %s2561 = smul.u32 4, %s19
      %p2562 = scmp.lt.s32.totalorder %s18, 1
      %s2563 = scalar_select %p2562, %s18, 1
      %p2564 = scmp.lt.s32.totalorder %s2561, 15
      %s2565 = scalar_select %p2564, %s2561, 15
      %s2566 = smul.addr %s2565, 8
      %s2567 = smul.addr %s2563, 128
      %s2568 = sadd.s32 %s2566, %s2567
      %s2569 = smul.addr %s2568, 8
      %s2570 = scalar_lea.vmem %s3, %s2569
      // Predicated region
      $region33: #{tpu_custom_call.1} parent=31 // pred_check
        %p2571 = pneg %p114
      $region34: #{tpu_custom_call.1} parent=31 // pred_check_branch
        %2573 = sbr.rel (%p2571) target = $region36
      $region35: #{tpu_custom_call.1} parent=31 // pred_region
        %s2574 = smul.u32 4, %s19
      $region36: #{tpu_custom_call.1} parent=31 // pred_fallthru
        _
    $region32: #{tpu_custom_call.1} parent=5 // pred_fallthru
      _
    %p2575 = scmp.le.s32.totalorder 2, %s9
    // Predicated region
    $region37: #{tpu_custom_call.1} parent=5 // pred_check
      %p2576 = pneg %p2575
    $region38: #{tpu_custom_call.1} parent=5 // pred_check_branch
      %2578 = sbr.rel (%p2576) target = $region40
    $region39: #{tpu_custom_call.1} parent=5 // pred_region
      %s2579 = ssub.s32 %s9, 2
      // Predicated region
      $region41: #{tpu_custom_call.1} parent=39 // pred_check
        %p2580 = pneg %p120
      $region42: #{tpu_custom_call.1} parent=39 // pred_check_branch
        %2582 = sbr.rel (%p2580) target = $region44
      $region43: #{tpu_custom_call.1} parent=39 // pred_region
        %s2583 = smul.u32 4, %s21
        %p2584 = scmp.lt.s32.totalorder %s20, 1
        %s2585 = scalar_select %p2584, %s20, 1
        %p2586 = scmp.lt.s32.totalorder %s2583, 15
        %s2587 = scalar_select %p2586, %s2583, 15
        %s2588 = smul.addr %s2587, 8
        %s2589 = smul.addr %s2585, 128
        %s2590 = sadd.s32 %s2588, %s2589
        %s2591 = smul.addr %s2590, 8
        %s2592 = scalar_lea.vmem %s3, %s2591
      $region44: #{tpu_custom_call.1} parent=39 // pred_fallthru
        _
    $region40: #{tpu_custom_call.1} parent=5 // pred_fallthru
      _
  $region6: #{tpu_custom_call.1} parent=0 // loop_footer
    %s13 = sadd.s32 1, %s9
  $region7: #{tpu_custom_call.1} parent=0 // loop_footer_branch
    %8 = sbr.rel target = $region3
  $region8: #{tpu_custom_call.1} parent=0 // loop_exit
    _

</llo_original>
